<compile_context>
chip_gen: v7x
topology: tpu7x:2x2x1
jax: 0.10.0
libtpu: 0.0.40
codegen_flags: <defaults>
</compile_context>

<pallas_src>
import functools

import numpy as np

import jax
import jax.numpy as jnp
from jax.experimental import pallas as pl
from jax.experimental.pallas import tpu as pltpu


# ----------------------------------------------------------------------------
# Fused Pallas kernel
# ----------------------------------------------------------------------------
def _elu(v):
    # F.elu with alpha=1.0 (exp of the positive branch is discarded by where).
    return jnp.where(v > 0, v, jnp.exp(v) - 1.0)


def _bottleneck_kernel(x_ref, pos_ref,
                       w1_ref, s1_ref, b1_ref,
                       w2_ref, s2_ref, b2_ref,
                       w3_ref, s3_ref, b3_ref,
                       *rest, hh, ww, has_projection, compute_dtype):
    if has_projection:
        wsc_ref, ssc_ref, bsc_ref, o_ref = rest
    else:
        (o_ref,) = rest

    nb = x_ref.shape[0]
    hw = hh * ww
    L = nb * hw                       # fused lane extent for this grid step

    # ---- weights / BN params: read once per grid step (already bf16 / f32) --
    w1 = w1_ref[...]                  # (planes, cin)       bf16
    w2 = w2_ref[...]                  # (planes, 9*planes)  bf16
    w3 = w3_ref[...]                  # (cexp,   planes)    bf16
    s1, b1 = s1_ref[...], b1_ref[...]   # (planes, 1) f32
    s2, b2 = s2_ref[...], b2_ref[...]   # (planes, 1) f32
    s3, b3 = s3_ref[...], b3_ref[...]   # (cexp,   1) f32

    # Precomputed per-lane spatial positions (host-built, no vector div/mod).
    hpos = pos_ref[0:1, :]            # (1, L) int32: row index within sample
    wpos = pos_ref[1:2, :]            # (1, L) int32: col index within sample

    # ---- stack the per-step batch along lanes: (C, nb*hw) -------------------
    # x_ref[s] is already channel-major (cin, hw); pieces are hw-lane aligned,
    # so this is a cheap dense copy (no transposes).
    x_all = jnp.concatenate([x_ref[s] for s in range(nb)], axis=1)   # (cin, L)
    x_mm = x_all.astype(compute_dtype)

    # ---- conv1 (1x1) + BN1 + ELU --------------------------------------------
    y1 = jnp.dot(w1, x_mm, preferred_element_type=jnp.float32)       # (planes, L)
    y1 = _elu(y1 * s1 + b1)

    # ---- conv2 (3x3, pad=1, stride=1) + BN2 + ELU ---------------------------
    # Nine taps via lane rolls + boundary masks, concatenated along the
    # contraction axis -> one K = 9*planes matmul.
    taps = []
    for kh in range(3):
        for kw in range(3):
            dh, dw = kh - 1, kw - 1
            off = dh * ww + dw
            t = y1 if off == 0 else pltpu.roll(y1, (-off) % L, axis=1)
            mask = None
            if dh < 0:
                mask = hpos >= -dh
            elif dh > 0:
                mask = hpos < hh - dh
            if dw < 0:
                m = wpos >= -dw
                mask = m if mask is None else (mask & m)
            elif dw > 0:
                m = wpos < ww - dw
                mask = m if mask is None else (mask & m)
            if mask is not None:
                t = jnp.where(mask, t, 0.0)
            taps.append(t)
    tap_cat = jnp.concatenate(taps, axis=0).astype(compute_dtype)    # (9*planes, L)

    y2 = jnp.dot(w2, tap_cat, preferred_element_type=jnp.float32)    # (planes, L)
    y2 = _elu(y2 * s2 + b2)

    # ---- conv3 (1x1) + BN3 ---------------------------------------------------
    y3 = jnp.dot(w3, y2.astype(compute_dtype),
                 preferred_element_type=jnp.float32)                 # (cexp, L)
    y3 = y3 * s3 + b3

    # ---- shortcut -------------------------------------------------------------
    if has_projection:
        sc = jnp.dot(wsc_ref[...], x_mm, preferred_element_type=jnp.float32)
        sc = sc * ssc_ref[...] + bsc_ref[...]
    else:
        sc = x_all.astype(jnp.float32)          # identity, exact f32 residual

    out = _elu(y3 + sc)                                              # (cexp, L) f32

    # ---- store channel-major, lane-dense (hw lanes per sample, aligned) ------
    for s in range(nb):
        o_ref[s] = out[:, s * hw:(s + 1) * hw].astype(o_ref.dtype)


# ----------------------------------------------------------------------------
# Wrapper
# ----------------------------------------------------------------------------
def bottleneck_forward(x_nchw, params, *, block_n=4, compute_dtype=jnp.bfloat16,
                       vmem_limit_bytes=48 * 1024 * 1024):
    """x_nchw: (N, Cin, H, W) float32 -> (N, 4*planes, H, W) float32 (stride=1)."""
    n, cin, hh, ww = x_nchw.shape
    planes = params["w1"].shape[1]
    cexp = params["w3"].shape[1]
    has_proj = "wsc" in params
    if not has_proj:
        assert cin == cexp, "identity shortcut requires in_planes == expansion*planes"
    block_n = min(block_n, n)
    assert n % block_n == 0, "batch must be divisible by block_n"
    hw = hh * ww
    L = block_n * hw

    # Free reshape to (N, C, H*W): channel-major per sample, lanes = H*W.
    x_flat = x_nchw.reshape(n, cin, hw)
    # Projection shortcut: x only feeds matmuls -> ship it in bf16 (halves
    # input DMA).  Identity shortcut: keep f32 for the exact residual.
    x_flat = x_flat.astype(compute_dtype if has_proj else jnp.float32)

    # Host-precomputed per-lane (row, col) positions for the conv2 boundary
    # masks -- avoids vector integer div/mod inside the kernel.
    jloc = np.arange(L, dtype=np.int64) % hw
    posmap = jnp.asarray(np.stack([jloc // ww, jloc % ww]).astype(np.int32))  # (2, L)

    # Pre-transpose weights to (Cout, Cin[*9]) and pre-cast to bf16 once,
    # outside the kernel.  BN scale/shift stay f32 (tiny; epilogue is f32).
    w1t = params["w1"].T.astype(compute_dtype)                              # (planes, cin)
    w2t = params["w2"].reshape(9 * planes, planes).T.astype(compute_dtype)  # (planes, 9*planes)
    w3t = params["w3"].T.astype(compute_dtype)                              # (cexp, planes)

    def cvec(a, c):  # per-channel vectors as (C, 1): broadcast along lanes
        return a.reshape(c, 1).astype(jnp.float32)

    args = [x_flat, posmap,
            w1t, cvec(params["s1"], planes), cvec(params["b1"], planes),
            w2t, cvec(params["s2"], planes), cvec(params["b2"], planes),
            w3t, cvec(params["s3"], cexp), cvec(params["b3"], cexp)]

    in_specs = [
        pl.BlockSpec((block_n, cin, hw), lambda i: (i, 0, 0)),
        pl.BlockSpec((2, L), lambda i: (0, 0)),
        pl.BlockSpec((planes, cin), lambda i: (0, 0)),
        pl.BlockSpec((planes, 1), lambda i: (0, 0)),
        pl.BlockSpec((planes, 1), lambda i: (0, 0)),
        pl.BlockSpec((planes, 9 * planes), lambda i: (0, 0)),
        pl.BlockSpec((planes, 1), lambda i: (0, 0)),
        pl.BlockSpec((planes, 1), lambda i: (0, 0)),
        pl.BlockSpec((cexp, planes), lambda i: (0, 0)),
        pl.BlockSpec((cexp, 1), lambda i: (0, 0)),
        pl.BlockSpec((cexp, 1), lambda i: (0, 0)),
    ]
    if has_proj:
        wsct = params["wsc"].T.astype(compute_dtype)                        # (cexp, cin)
        args += [wsct, cvec(params["ssc"], cexp), cvec(params["bsc"], cexp)]
        in_specs += [pl.BlockSpec((cexp, cin), lambda i: (0, 0)),
                     pl.BlockSpec((cexp, 1), lambda i: (0, 0)),
                     pl.BlockSpec((cexp, 1), lambda i: (0, 0))]

    kernel = functools.partial(_bottleneck_kernel, hh=hh, ww=ww,
                               has_projection=has_proj,
                               compute_dtype=compute_dtype)

    out = pl.pallas_call(
        kernel,
        out_shape=jax.ShapeDtypeStruct((n, cexp, hw), jnp.float32),
        grid=(n // block_n,),
        in_specs=in_specs,
        out_specs=pl.BlockSpec((block_n, cexp, hw), lambda i: (i, 0, 0)),
        compiler_params=pltpu.CompilerParams(
            dimension_semantics=("parallel",),
            vmem_limit_bytes=vmem_limit_bytes),
    )(*args)

    return out.reshape(n, cexp, hh, ww)       # free reshape back to NCHW


# ----------------------------------------------------------------------------
# Parameters (BN folded, inference mode) + pure-JAX f32 reference
# ----------------------------------------------------------------------------
def _bn_fold(key, c, eps=1e-5):
    k1, k2, k3, k4 = jax.random.split(key, 4)
    gamma = jax.random.uniform(k1, (c,), jnp.float32, 0.5, 1.5)
    beta = 0.1 * jax.random.normal(k2, (c,), jnp.float32)
    mean = 0.1 * jax.random.normal(k3, (c,), jnp.float32)
    var = jax.random.uniform(k4, (c,), jnp.float32, 0.5, 1.5)
    scale = gamma / jnp.sqrt(var + eps)
    shift = beta - mean * scale
    return scale.reshape(1, c), shift.reshape(1, c)


def init_params(key, in_planes, planes, expansion=4):
    cexp = expansion * planes
    ks = jax.random.split(key, 8)

    def unif(k, shape, fan_in):
        b = 1.0 / jnp.sqrt(jnp.float32(fan_in))
        return jax.random.uniform(k, shape, jnp.float32, -b, b)

    params = dict(
        w1=unif(ks[0], (in_planes, planes), in_planes),        # 1x1: (Cin, Cout)
        w2=unif(ks[1], (9, planes, planes), 9 * planes),       # 3x3: (kh*3+kw, Cin, Cout)
        w3=unif(ks[2], (planes, cexp), planes),                # 1x1: (Cin, Cout)
    )
    params["s1"], params["b1"] = _bn_fold(ks[3], planes)
    params["s2"], params["b2"] = _bn_fold(ks[4], planes)
    params["s3"], params["b3"] = _bn_fold(ks[5], cexp)
    if in_planes != cexp:                                      # stride=1 projection
        params["wsc"] = unif(ks[6], (in_planes, cexp), in_planes)
        params["ssc"], params["bsc"] = _bn_fold(ks[7], cexp)
    return params


def bottleneck_ref(x_nchw, params):
    """Pure-JAX f32 reference (eval-mode BN), NCHW in/out."""
    x = jnp.transpose(x_nchw, (0, 2, 3, 1)).astype(jnp.float32)

    def bn(v, s, b):
        return v * s.reshape(1, 1, 1, -1) + b.reshape(1, 1, 1, -1)

    def elu(v):
        return jnp.where(v > 0, v, jnp.exp(v) - 1.0)

    p = params["w1"].shape[1]
    y = elu(bn(jnp.einsum("nhwc,cd->nhwd", x, params["w1"]), params["s1"], params["b1"]))
    w2 = params["w2"].reshape(3, 3, p, p)                      # HWIO
    y = jax.lax.conv_general_dilated(y, w2, window_strides=(1, 1),
                                     padding=((1, 1), (1, 1)),
                                     dimension_numbers=("NHWC", "HWIO", "NHWC"))
    y = elu(bn(y, params["s2"], params["b2"]))
    y = bn(jnp.einsum("nhwc,cd->nhwd", y, params["w3"]), params["s3"], params["b3"])
    if "wsc" in params:
        sc = bn(jnp.einsum("nhwc,cd->nhwd", x, params["wsc"]), params["ssc"], params["bsc"])
    else:
        sc = x
    out = elu(y + sc)
    return jnp.transpose(out, (0, 3, 1, 2))


# ----------------------------------------------------------------------------
# Demo / self-check
# ----------------------------------------------------------------------------
def _check(name, out, ref):
    assert out.shape == ref.shape and out.dtype == jnp.float32
    err = float(jnp.max(jnp.abs(out - ref)))
    scale = float(jnp.max(jnp.abs(ref))) + 1e-6
    tol = 0.08 * max(1.0, scale)                # bf16 matmul operands vs f32 reference
    assert err <= tol, f"{name}: max abs err {err:.4f} > tol {tol:.4f}"


if __name__ == "__main__":
    key = jax.random.PRNGKey(0)
    kp_a, kp_b, kd_a, kd_b = jax.random.split(key, 4)

    fwd = jax.jit(functools.partial(bottleneck_forward, block_n=4,
                                    compute_dtype=jnp.bfloat16))

    # Config A: projection shortcut (in_planes != expansion*planes), stride=1.
    in_a, planes_a = 16, 8
    params_a = init_params(kp_a, in_a, planes_a)
    x_a = jax.random.normal(kd_a, (8, in_a, 16, 16), jnp.float32)
    out_a = fwd(x_a, params_a)
    jax.block_until_ready(out_a)
    _check("projection", out_a, bottleneck_ref(x_a, params_a))

    # Config B: identity shortcut (in_planes == expansion*planes).
    in_b, planes_b = 32, 8
    params_b = init_params(kp_b, in_b, planes_b)
    x_b = jax.random.normal(kd_b, (8, in_b, 16, 16), jnp.float32)
    out_b = fwd(x_b, params_b)
    jax.block_until_ready(out_b)
    _check("identity", out_b, bottleneck_ref(x_b, params_b))

    print("KERNEL_OK")
</pallas_src>

<mosaic_0001>
module attributes {stable_mosaic.version = 11 : i64} {
  func.func @_bottleneck_kernel(%arg0: i32, %arg1: memref<4x16x256xbf16, #tpu.memory_space<vmem>>, %arg2: memref<2x1024xi32, #tpu.memory_space<vmem>>, %arg3: memref<8x16xbf16, #tpu.memory_space<vmem>>, %arg4: memref<8x1xf32, #tpu.memory_space<vmem>>, %arg5: memref<8x1xf32, #tpu.memory_space<vmem>>, %arg6: memref<8x72xbf16, #tpu.memory_space<vmem>>, %arg7: memref<8x1xf32, #tpu.memory_space<vmem>>, %arg8: memref<8x1xf32, #tpu.memory_space<vmem>>, %arg9: memref<32x8xbf16, #tpu.memory_space<vmem>>, %arg10: memref<32x1xf32, #tpu.memory_space<vmem>>, %arg11: memref<32x1xf32, #tpu.memory_space<vmem>>, %arg12: memref<32x16xbf16, #tpu.memory_space<vmem>>, %arg13: memref<32x1xf32, #tpu.memory_space<vmem>>, %arg14: memref<32x1xf32, #tpu.memory_space<vmem>>, %arg15: memref<4x32x256xf32, #tpu.memory_space<vmem>>) attributes {dimension_semantics = [#tpu.dimension_semantics<parallel>], iteration_bounds = array<i64: 2>, scalar_prefetch = 0 : i64, scratch_operands = 0 : i64, tpu.core_type = #tpu.core_type<tc>, window_params = [{transform_indices = @transform_0, window_bounds = array<i64: 4, 16, 256>}, {pipeline_mode = #tpu.pipeline_mode<synchronous>, transform_indices = @transform_1, window_bounds = array<i64: 2, 1024>}, {pipeline_mode = #tpu.pipeline_mode<synchronous>, transform_indices = @transform_2, window_bounds = array<i64: 8, 16>}, {pipeline_mode = #tpu.pipeline_mode<synchronous>, transform_indices = @transform_3, window_bounds = array<i64: 8, 1>}, {pipeline_mode = #tpu.pipeline_mode<synchronous>, transform_indices = @transform_4, window_bounds = array<i64: 8, 1>}, {pipeline_mode = #tpu.pipeline_mode<synchronous>, transform_indices = @transform_5, window_bounds = array<i64: 8, 72>}, {pipeline_mode = #tpu.pipeline_mode<synchronous>, transform_indices = @transform_6, window_bounds = array<i64: 8, 1>}, {pipeline_mode = #tpu.pipeline_mode<synchronous>, transform_indices = @transform_7, window_bounds = array<i64: 8, 1>}, {pipeline_mode = #tpu.pipeline_mode<synchronous>, transform_indices = @transform_8, window_bounds = array<i64: 32, 8>}, {pipeline_mode = #tpu.pipeline_mode<synchronous>, transform_indices = @transform_9, window_bounds = array<i64: 32, 1>}, {pipeline_mode = #tpu.pipeline_mode<synchronous>, transform_indices = @transform_10, window_bounds = array<i64: 32, 1>}, {pipeline_mode = #tpu.pipeline_mode<synchronous>, transform_indices = @transform_11, window_bounds = array<i64: 32, 16>}, {pipeline_mode = #tpu.pipeline_mode<synchronous>, transform_indices = @transform_12, window_bounds = array<i64: 32, 1>}, {pipeline_mode = #tpu.pipeline_mode<synchronous>, transform_indices = @transform_13, window_bounds = array<i64: 32, 1>}, {transform_indices = @transform_14, window_bounds = array<i64: 4, 32, 256>}]} {
    %c0 = arith.constant 0 : index
    %c0_0 = arith.constant 0 : index
    %0 = vector.load %arg3[%c0, %c0_0] : memref<8x16xbf16, #tpu.memory_space<vmem>>, vector<8x16xbf16>
    %c0_1 = arith.constant 0 : index
    %c0_2 = arith.constant 0 : index
    %1 = vector.load %arg6[%c0_1, %c0_2] : memref<8x72xbf16, #tpu.memory_space<vmem>>, vector<8x72xbf16>
    %c0_3 = arith.constant 0 : index
    %c0_4 = arith.constant 0 : index
    %2 = vector.load %arg9[%c0_3, %c0_4] : memref<32x8xbf16, #tpu.memory_space<vmem>>, vector<32x8xbf16>
    %c0_5 = arith.constant 0 : index
    %c0_6 = arith.constant 0 : index
    %3 = vector.load %arg4[%c0_5, %c0_6] : memref<8x1xf32, #tpu.memory_space<vmem>>, vector<8x1xf32>
    %c0_7 = arith.constant 0 : index
    %c0_8 = arith.constant 0 : index
    %4 = vector.load %arg5[%c0_7, %c0_8] : memref<8x1xf32, #tpu.memory_space<vmem>>, vector<8x1xf32>
    %c0_9 = arith.constant 0 : index
    %c0_10 = arith.constant 0 : index
    %5 = vector.load %arg7[%c0_9, %c0_10] : memref<8x1xf32, #tpu.memory_space<vmem>>, vector<8x1xf32>
    %c0_11 = arith.constant 0 : index
    %c0_12 = arith.constant 0 : index
    %6 = vector.load %arg8[%c0_11, %c0_12] : memref<8x1xf32, #tpu.memory_space<vmem>>, vector<8x1xf32>
    %c0_13 = arith.constant 0 : index
    %c0_14 = arith.constant 0 : index
    %7 = vector.load %arg10[%c0_13, %c0_14] : memref<32x1xf32, #tpu.memory_space<vmem>>, vector<32x1xf32>
    %c0_15 = arith.constant 0 : index
    %c0_16 = arith.constant 0 : index
    %8 = vector.load %arg11[%c0_15, %c0_16] : memref<32x1xf32, #tpu.memory_space<vmem>>, vector<32x1xf32>
    %c0_17 = arith.constant 0 : index
    %c0_18 = arith.constant 0 : index
    %9 = vector.load %arg2[%c0_17, %c0_18] : memref<2x1024xi32, #tpu.memory_space<vmem>>, vector<1x1024xi32>
    %c1 = arith.constant 1 : index
    %c0_19 = arith.constant 0 : index
    %10 = vector.load %arg2[%c1, %c0_19] : memref<2x1024xi32, #tpu.memory_space<vmem>>, vector<1x1024xi32>
    %c0_20 = arith.constant 0 : index
    %c0_21 = arith.constant 0 : index
    %c0_22 = arith.constant 0 : index
    %11 = vector.load %arg1[%c0_20, %c0_21, %c0_22] : memref<4x16x256xbf16, #tpu.memory_space<vmem>>, vector<1x16x256xbf16>
    %12 = vector.shape_cast %11 : vector<1x16x256xbf16> to vector<16x256xbf16>
    %c1_23 = arith.constant 1 : index
    %c0_24 = arith.constant 0 : index
    %c0_25 = arith.constant 0 : index
    %13 = vector.load %arg1[%c1_23, %c0_24, %c0_25] : memref<4x16x256xbf16, #tpu.memory_space<vmem>>, vector<1x16x256xbf16>
    %14 = vector.shape_cast %13 : vector<1x16x256xbf16> to vector<16x256xbf16>
    %c2 = arith.constant 2 : index
    %c0_26 = arith.constant 0 : index
    %c0_27 = arith.constant 0 : index
    %15 = vector.load %arg1[%c2, %c0_26, %c0_27] : memref<4x16x256xbf16, #tpu.memory_space<vmem>>, vector<1x16x256xbf16>
    %16 = vector.shape_cast %15 : vector<1x16x256xbf16> to vector<16x256xbf16>
    %c3 = arith.constant 3 : index
    %c0_28 = arith.constant 0 : index
    %c0_29 = arith.constant 0 : index
    %17 = vector.load %arg1[%c3, %c0_28, %c0_29] : memref<4x16x256xbf16, #tpu.memory_space<vmem>>, vector<1x16x256xbf16>
    %18 = vector.shape_cast %17 : vector<1x16x256xbf16> to vector<16x256xbf16>
    %19 = tpu.concatenate %12, %14, %16, %18 in 1 : vector<16x256xbf16>, vector<16x256xbf16>, vector<16x256xbf16>, vector<16x256xbf16> -> vector<16x1024xbf16>
    %cst = arith.constant dense<0.000000e+00> : vector<8x1024xf32>
    %20 = tpu.matmul %0, %19, %cst {dimension_numbers = #tpu.dot_dimension_numbers<[1], [0], [0], [1], [0, 0, 1, 1], [], []>} : vector<8x16xbf16>, vector<16x1024xbf16>, vector<8x1024xf32> -> vector<8x1024xf32>
    %21 = vector.broadcast %3 : vector<8x1xf32> to vector<8x1024xf32>
    %22 = arith.mulf %20, %21 : vector<8x1024xf32>
    %23 = vector.broadcast %4 : vector<8x1xf32> to vector<8x1024xf32>
    %24 = arith.addf %22, %23 : vector<8x1024xf32>
    %cst_30 = arith.constant 0.000000e+00 : f32
    %25 = vector.broadcast %cst_30 : f32 to vector<8x1024xf32>
    %26 = arith.cmpf ogt, %24, %25 : vector<8x1024xf32>
    %27 = math.exp %24 : vector<8x1024xf32>
    %cst_31 = arith.constant 1.000000e+00 : f32
    %28 = vector.broadcast %cst_31 : f32 to vector<8x1024xf32>
    %29 = arith.subf %27, %28 : vector<8x1024xf32>
    %30 = arith.select %26, %24, %29 : vector<8x1024xi1>, vector<8x1024xf32>
    %c17_i32 = arith.constant 17 : i32
    %31 = tpu.dynamic_rotate %30 by %c17_i32 dim 1 : vector<8x1024xf32>, i32 -> vector<8x1024xf32>
    %c1_i32 = arith.constant 1 : i32
    %32 = vector.broadcast %c1_i32 : i32 to vector<1x1024xi32>
    %33 = arith.cmpi sge, %9, %32 : vector<1x1024xi32>
    %c1_i32_32 = arith.constant 1 : i32
    %34 = vector.broadcast %c1_i32_32 : i32 to vector<1x1024xi32>
    %35 = arith.cmpi sge, %10, %34 : vector<1x1024xi32>
    %36 = arith.andi %33, %35 : vector<1x1024xi1>
    %cst_33 = arith.constant 0.000000e+00 : f32
    %37 = vector.shape_cast %36 : vector<1x1024xi1> to vector<1x1024xi1>
    %38 = vector.broadcast %37 : vector<1x1024xi1> to vector<8x1024xi1>
    %39 = vector.broadcast %cst_33 : f32 to vector<8x1024xf32>
    %40 = arith.select %38, %31, %39 : vector<8x1024xi1>, vector<8x1024xf32>
    %c16_i32 = arith.constant 16 : i32
    %41 = tpu.dynamic_rotate %30 by %c16_i32 dim 1 : vector<8x1024xf32>, i32 -> vector<8x1024xf32>
    %c1_i32_34 = arith.constant 1 : i32
    %42 = vector.broadcast %c1_i32_34 : i32 to vector<1x1024xi32>
    %43 = arith.cmpi sge, %9, %42 : vector<1x1024xi32>
    %cst_35 = arith.constant 0.000000e+00 : f32
    %44 = vector.shape_cast %43 : vector<1x1024xi1> to vector<1x1024xi1>
    %45 = vector.broadcast %44 : vector<1x1024xi1> to vector<8x1024xi1>
    %46 = vector.broadcast %cst_35 : f32 to vector<8x1024xf32>
    %47 = arith.select %45, %41, %46 : vector<8x1024xi1>, vector<8x1024xf32>
    %c15_i32 = arith.constant 15 : i32
    %48 = tpu.dynamic_rotate %30 by %c15_i32 dim 1 : vector<8x1024xf32>, i32 -> vector<8x1024xf32>
    %c1_i32_36 = arith.constant 1 : i32
    %49 = vector.broadcast %c1_i32_36 : i32 to vector<1x1024xi32>
    %50 = arith.cmpi sge, %9, %49 : vector<1x1024xi32>
    %c15_i32_37 = arith.constant 15 : i32
    %51 = vector.broadcast %c15_i32_37 : i32 to vector<1x1024xi32>
    %52 = arith.cmpi slt, %10, %51 : vector<1x1024xi32>
    %53 = arith.andi %50, %52 : vector<1x1024xi1>
    %cst_38 = arith.constant 0.000000e+00 : f32
    %54 = vector.shape_cast %53 : vector<1x1024xi1> to vector<1x1024xi1>
    %55 = vector.broadcast %54 : vector<1x1024xi1> to vector<8x1024xi1>
    %56 = vector.broadcast %cst_38 : f32 to vector<8x1024xf32>
    %57 = arith.select %55, %48, %56 : vector<8x1024xi1>, vector<8x1024xf32>
    %c1_i32_39 = arith.constant 1 : i32
    %58 = tpu.dynamic_rotate %30 by %c1_i32_39 dim 1 : vector<8x1024xf32>, i32 -> vector<8x1024xf32>
    %c1_i32_40 = arith.constant 1 : i32
    %59 = vector.broadcast %c1_i32_40 : i32 to vector<1x1024xi32>
    %60 = arith.cmpi sge, %10, %59 : vector<1x1024xi32>
    %cst_41 = arith.constant 0.000000e+00 : f32
    %61 = vector.shape_cast %60 : vector<1x1024xi1> to vector<1x1024xi1>
    %62 = vector.broadcast %61 : vector<1x1024xi1> to vector<8x1024xi1>
    %63 = vector.broadcast %cst_41 : f32 to vector<8x1024xf32>
    %64 = arith.select %62, %58, %63 : vector<8x1024xi1>, vector<8x1024xf32>
    %c1023_i32 = arith.constant 1023 : i32
    %65 = tpu.dynamic_rotate %30 by %c1023_i32 dim 1 : vector<8x1024xf32>, i32 -> vector<8x1024xf32>
    %c15_i32_42 = arith.constant 15 : i32
    %66 = vector.broadcast %c15_i32_42 : i32 to vector<1x1024xi32>
    %67 = arith.cmpi slt, %10, %66 : vector<1x1024xi32>
    %cst_43 = arith.constant 0.000000e+00 : f32
    %68 = vector.shape_cast %67 : vector<1x1024xi1> to vector<1x1024xi1>
    %69 = vector.broadcast %68 : vector<1x1024xi1> to vector<8x1024xi1>
    %70 = vector.broadcast %cst_43 : f32 to vector<8x1024xf32>
    %71 = arith.select %69, %65, %70 : vector<8x1024xi1>, vector<8x1024xf32>
    %c1009_i32 = arith.constant 1009 : i32
    %72 = tpu.dynamic_rotate %30 by %c1009_i32 dim 1 : vector<8x1024xf32>, i32 -> vector<8x1024xf32>
    %c15_i32_44 = arith.constant 15 : i32
    %73 = vector.broadcast %c15_i32_44 : i32 to vector<1x1024xi32>
    %74 = arith.cmpi slt, %9, %73 : vector<1x1024xi32>
    %c1_i32_45 = arith.constant 1 : i32
    %75 = vector.broadcast %c1_i32_45 : i32 to vector<1x1024xi32>
    %76 = arith.cmpi sge, %10, %75 : vector<1x1024xi32>
    %77 = arith.andi %74, %76 : vector<1x1024xi1>
    %cst_46 = arith.constant 0.000000e+00 : f32
    %78 = vector.shape_cast %77 : vector<1x1024xi1> to vector<1x1024xi1>
    %79 = vector.broadcast %78 : vector<1x1024xi1> to vector<8x1024xi1>
    %80 = vector.broadcast %cst_46 : f32 to vector<8x1024xf32>
    %81 = arith.select %79, %72, %80 : vector<8x1024xi1>, vector<8x1024xf32>
    %c1008_i32 = arith.constant 1008 : i32
    %82 = tpu.dynamic_rotate %30 by %c1008_i32 dim 1 : vector<8x1024xf32>, i32 -> vector<8x1024xf32>
    %c15_i32_47 = arith.constant 15 : i32
    %83 = vector.broadcast %c15_i32_47 : i32 to vector<1x1024xi32>
    %84 = arith.cmpi slt, %9, %83 : vector<1x1024xi32>
    %cst_48 = arith.constant 0.000000e+00 : f32
    %85 = vector.shape_cast %84 : vector<1x1024xi1> to vector<1x1024xi1>
    %86 = vector.broadcast %85 : vector<1x1024xi1> to vector<8x1024xi1>
    %87 = vector.broadcast %cst_48 : f32 to vector<8x1024xf32>
    %88 = arith.select %86, %82, %87 : vector<8x1024xi1>, vector<8x1024xf32>
    %c1007_i32 = arith.constant 1007 : i32
    %89 = tpu.dynamic_rotate %30 by %c1007_i32 dim 1 : vector<8x1024xf32>, i32 -> vector<8x1024xf32>
    %c15_i32_49 = arith.constant 15 : i32
    %90 = vector.broadcast %c15_i32_49 : i32 to vector<1x1024xi32>
    %91 = arith.cmpi slt, %9, %90 : vector<1x1024xi32>
    %c15_i32_50 = arith.constant 15 : i32
    %92 = vector.broadcast %c15_i32_50 : i32 to vector<1x1024xi32>
    %93 = arith.cmpi slt, %10, %92 : vector<1x1024xi32>
    %94 = arith.andi %91, %93 : vector<1x1024xi1>
    %cst_51 = arith.constant 0.000000e+00 : f32
    %95 = vector.shape_cast %94 : vector<1x1024xi1> to vector<1x1024xi1>
    %96 = vector.broadcast %95 : vector<1x1024xi1> to vector<8x1024xi1>
    %97 = vector.broadcast %cst_51 : f32 to vector<8x1024xf32>
    %98 = arith.select %96, %89, %97 : vector<8x1024xi1>, vector<8x1024xf32>
    %99 = tpu.concatenate %40, %47, %57, %64, %30, %71, %81, %88, %98 in 0 : vector<8x1024xf32>, vector<8x1024xf32>, vector<8x1024xf32>, vector<8x1024xf32>, vector<8x1024xf32>, vector<8x1024xf32>, vector<8x1024xf32>, vector<8x1024xf32>, vector<8x1024xf32> -> vector<72x1024xf32>
    %100 = arith.truncf %99 : vector<72x1024xf32> to vector<72x1024xbf16>
    %cst_52 = arith.constant dense<0.000000e+00> : vector<8x1024xf32>
    %101 = tpu.matmul %1, %100, %cst_52 {dimension_numbers = #tpu.dot_dimension_numbers<[1], [0], [0], [1], [0, 0, 1, 1], [], []>} : vector<8x72xbf16>, vector<72x1024xbf16>, vector<8x1024xf32> -> vector<8x1024xf32>
    %102 = vector.broadcast %5 : vector<8x1xf32> to vector<8x1024xf32>
    %103 = arith.mulf %101, %102 : vector<8x1024xf32>
    %104 = vector.broadcast %6 : vector<8x1xf32> to vector<8x1024xf32>
    %105 = arith.addf %103, %104 : vector<8x1024xf32>
    %cst_53 = arith.constant 0.000000e+00 : f32
    %106 = vector.broadcast %cst_53 : f32 to vector<8x1024xf32>
    %107 = arith.cmpf ogt, %105, %106 : vector<8x1024xf32>
    %108 = math.exp %105 : vector<8x1024xf32>
    %cst_54 = arith.constant 1.000000e+00 : f32
    %109 = vector.broadcast %cst_54 : f32 to vector<8x1024xf32>
    %110 = arith.subf %108, %109 : vector<8x1024xf32>
    %111 = arith.select %107, %105, %110 : vector<8x1024xi1>, vector<8x1024xf32>
    %112 = arith.truncf %111 : vector<8x1024xf32> to vector<8x1024xbf16>
    %cst_55 = arith.constant dense<0.000000e+00> : vector<32x1024xf32>
    %113 = tpu.matmul %2, %112, %cst_55 {dimension_numbers = #tpu.dot_dimension_numbers<[1], [0], [0], [1], [0, 0, 1, 1], [], []>} : vector<32x8xbf16>, vector<8x1024xbf16>, vector<32x1024xf32> -> vector<32x1024xf32>
    %114 = vector.broadcast %7 : vector<32x1xf32> to vector<32x1024xf32>
    %115 = arith.mulf %113, %114 : vector<32x1024xf32>
    %116 = vector.broadcast %8 : vector<32x1xf32> to vector<32x1024xf32>
    %117 = arith.addf %115, %116 : vector<32x1024xf32>
    %c0_56 = arith.constant 0 : index
    %c0_57 = arith.constant 0 : index
    %118 = vector.load %arg12[%c0_56, %c0_57] : memref<32x16xbf16, #tpu.memory_space<vmem>>, vector<32x16xbf16>
    %cst_58 = arith.constant dense<0.000000e+00> : vector<32x1024xf32>
    %119 = tpu.matmul %118, %19, %cst_58 {dimension_numbers = #tpu.dot_dimension_numbers<[1], [0], [0], [1], [0, 0, 1, 1], [], []>} : vector<32x16xbf16>, vector<16x1024xbf16>, vector<32x1024xf32> -> vector<32x1024xf32>
    %c0_59 = arith.constant 0 : index
    %c0_60 = arith.constant 0 : index
    %120 = vector.load %arg13[%c0_59, %c0_60] : memref<32x1xf32, #tpu.memory_space<vmem>>, vector<32x1xf32>
    %121 = vector.broadcast %120 : vector<32x1xf32> to vector<32x1024xf32>
    %122 = arith.mulf %119, %121 : vector<32x1024xf32>
    %c0_61 = arith.constant 0 : index
    %c0_62 = arith.constant 0 : index
    %123 = vector.load %arg14[%c0_61, %c0_62] : memref<32x1xf32, #tpu.memory_space<vmem>>, vector<32x1xf32>
    %124 = vector.broadcast %123 : vector<32x1xf32> to vector<32x1024xf32>
    %125 = arith.addf %122, %124 : vector<32x1024xf32>
    %126 = arith.addf %117, %125 : vector<32x1024xf32>
    %cst_63 = arith.constant 0.000000e+00 : f32
    %127 = vector.broadcast %cst_63 : f32 to vector<32x1024xf32>
    %128 = arith.cmpf ogt, %126, %127 : vector<32x1024xf32>
    %129 = math.exp %126 : vector<32x1024xf32>
    %cst_64 = arith.constant 1.000000e+00 : f32
    %130 = vector.broadcast %cst_64 : f32 to vector<32x1024xf32>
    %131 = arith.subf %129, %130 : vector<32x1024xf32>
    %132 = arith.select %128, %126, %131 : vector<32x1024xi1>, vector<32x1024xf32>
    %133 = vector.extract_strided_slice %132 {offsets = [0, 0], sizes = [32, 256], strides = [1, 1]} : vector<32x1024xf32> to vector<32x256xf32>
    %c0_65 = arith.constant 0 : index
    %c0_66 = arith.constant 0 : index
    %c0_67 = arith.constant 0 : index
    %134 = vector.load %arg15[%c0_65, %c0_66, %c0_67] : memref<4x32x256xf32, #tpu.memory_space<vmem>>, vector<1x32x256xf32>
    %135 = vector.shape_cast %134 : vector<1x32x256xf32> to vector<32x256xf32>
    %136 = vector.shape_cast %133 : vector<32x256xf32> to vector<1x32x256xf32>
    tpu.vector_store %arg15[%c0_65, %c0_66, %c0_67], %136 {strides = array<i32>} : memref<4x32x256xf32, #tpu.memory_space<vmem>>, vector<1x32x256xf32>,
    %137 = vector.extract_strided_slice %132 {offsets = [0, 256], sizes = [32, 256], strides = [1, 1]} : vector<32x1024xf32> to vector<32x256xf32>
    %c1_68 = arith.constant 1 : index
    %c0_69 = arith.constant 0 : index
    %c0_70 = arith.constant 0 : index
    %138 = vector.load %arg15[%c1_68, %c0_69, %c0_70] : memref<4x32x256xf32, #tpu.memory_space<vmem>>, vector<1x32x256xf32>
    %139 = vector.shape_cast %138 : vector<1x32x256xf32> to vector<32x256xf32>
    %140 = vector.shape_cast %137 : vector<32x256xf32> to vector<1x32x256xf32>
    tpu.vector_store %arg15[%c1_68, %c0_69, %c0_70], %140 {strides = array<i32>} : memref<4x32x256xf32, #tpu.memory_space<vmem>>, vector<1x32x256xf32>,
    %141 = vector.extract_strided_slice %132 {offsets = [0, 512], sizes = [32, 256], strides = [1, 1]} : vector<32x1024xf32> to vector<32x256xf32>
    %c2_71 = arith.constant 2 : index
    %c0_72 = arith.constant 0 : index
    %c0_73 = arith.constant 0 : index
    %142 = vector.load %arg15[%c2_71, %c0_72, %c0_73] : memref<4x32x256xf32, #tpu.memory_space<vmem>>, vector<1x32x256xf32>
    %143 = vector.shape_cast %142 : vector<1x32x256xf32> to vector<32x256xf32>
    %144 = vector.shape_cast %141 : vector<32x256xf32> to vector<1x32x256xf32>
    tpu.vector_store %arg15[%c2_71, %c0_72, %c0_73], %144 {strides = array<i32>} : memref<4x32x256xf32, #tpu.memory_space<vmem>>, vector<1x32x256xf32>,
    %145 = vector.extract_strided_slice %132 {offsets = [0, 768], sizes = [32, 256], strides = [1, 1]} : vector<32x1024xf32> to vector<32x256xf32>
    %c3_74 = arith.constant 3 : index
    %c0_75 = arith.constant 0 : index
    %c0_76 = arith.constant 0 : index
    %146 = vector.load %arg15[%c3_74, %c0_75, %c0_76] : memref<4x32x256xf32, #tpu.memory_space<vmem>>, vector<1x32x256xf32>
    %147 = vector.shape_cast %146 : vector<1x32x256xf32> to vector<32x256xf32>
    %148 = vector.shape_cast %145 : vector<32x256xf32> to vector<1x32x256xf32>
    tpu.vector_store %arg15[%c3_74, %c0_75, %c0_76], %148 {strides = array<i32>} : memref<4x32x256xf32, #tpu.memory_space<vmem>>, vector<1x32x256xf32>,
    return
  }
  func.func @transform_0(%arg0: i32) -> (i32, i32, i32) {
    %c0_i32 = arith.constant 0 : i32
    %c0_i32_0 = arith.constant 0 : i32
    %c0_i32_1 = arith.constant 0 : i32
    return %arg0, %c0_i32, %c0_i32_0 : i32, i32, i32
  }
  func.func @transform_1(%arg0: i32) -> (i32, i32) {
    %c0_i32 = arith.constant 0 : i32
    %c0_i32_0 = arith.constant 0 : i32
    %c0_i32_1 = arith.constant 0 : i32
    return %c0_i32, %c0_i32_0 : i32, i32
  }
  func.func @transform_2(%arg0: i32) -> (i32, i32) {
    %c0_i32 = arith.constant 0 : i32
    %c0_i32_0 = arith.constant 0 : i32
    %c0_i32_1 = arith.constant 0 : i32
    return %c0_i32, %c0_i32_0 : i32, i32
  }
  func.func @transform_3(%arg0: i32) -> (i32, i32) {
    %c0_i32 = arith.constant 0 : i32
    %c0_i32_0 = arith.constant 0 : i32
    %c0_i32_1 = arith.constant 0 : i32
    return %c0_i32, %c0_i32_0 : i32, i32
  }
  func.func @transform_4(%arg0: i32) -> (i32, i32) {
    %c0_i32 = arith.constant 0 : i32
    %c0_i32_0 = arith.constant 0 : i32
    %c0_i32_1 = arith.constant 0 : i32
    return %c0_i32, %c0_i32_0 : i32, i32
  }
  func.func @transform_5(%arg0: i32) -> (i32, i32) {
    %c0_i32 = arith.constant 0 : i32
    %c0_i32_0 = arith.constant 0 : i32
    %c0_i32_1 = arith.constant 0 : i32
    return %c0_i32, %c0_i32_0 : i32, i32
  }
  func.func @transform_6(%arg0: i32) -> (i32, i32) {
    %c0_i32 = arith.constant 0 : i32
    %c0_i32_0 = arith.constant 0 : i32
    %c0_i32_1 = arith.constant 0 : i32
    return %c0_i32, %c0_i32_0 : i32, i32
  }
  func.func @transform_7(%arg0: i32) -> (i32, i32) {
    %c0_i32 = arith.constant 0 : i32
    %c0_i32_0 = arith.constant 0 : i32
    %c0_i32_1 = arith.constant 0 : i32
    return %c0_i32, %c0_i32_0 : i32, i32
  }
  func.func @transform_8(%arg0: i32) -> (i32, i32) {
    %c0_i32 = arith.constant 0 : i32
    %c0_i32_0 = arith.constant 0 : i32
    %c0_i32_1 = arith.constant 0 : i32
    return %c0_i32, %c0_i32_0 : i32, i32
  }
  func.func @transform_9(%arg0: i32) -> (i32, i32) {
    %c0_i32 = arith.constant 0 : i32
    %c0_i32_0 = arith.constant 0 : i32
    %c0_i32_1 = arith.constant 0 : i32
    return %c0_i32, %c0_i32_0 : i32, i32
  }
  func.func @transform_10(%arg0: i32) -> (i32, i32) {
    %c0_i32 = arith.constant 0 : i32
    %c0_i32_0 = arith.constant 0 : i32
    %c0_i32_1 = arith.constant 0 : i32
    return %c0_i32, %c0_i32_0 : i32, i32
  }
  func.func @transform_11(%arg0: i32) -> (i32, i32) {
    %c0_i32 = arith.constant 0 : i32
    %c0_i32_0 = arith.constant 0 : i32
    %c0_i32_1 = arith.constant 0 : i32
    return %c0_i32, %c0_i32_0 : i32, i32
  }
  func.func @transform_12(%arg0: i32) -> (i32, i32) {
    %c0_i32 = arith.constant 0 : i32
    %c0_i32_0 = arith.constant 0 : i32
    %c0_i32_1 = arith.constant 0 : i32
    return %c0_i32, %c0_i32_0 : i32, i32
  }
  func.func @transform_13(%arg0: i32) -> (i32, i32) {
    %c0_i32 = arith.constant 0 : i32
    %c0_i32_0 = arith.constant 0 : i32
    %c0_i32_1 = arith.constant 0 : i32
    return %c0_i32, %c0_i32_0 : i32, i32
  }
  func.func @transform_14(%arg0: i32) -> (i32, i32, i32) {
    %c0_i32 = arith.constant 0 : i32
    %c0_i32_0 = arith.constant 0 : i32
    %c0_i32_1 = arith.constant 0 : i32
    return %arg0, %c0_i32, %c0_i32_0 : i32, i32, i32
  }
}

</mosaic_0001>

<llo_original>
// kernel: bottleneck_forward.1
$region0: #{bottleneck_forward.1}
  #allocation0 [shape = 'u32[]', space=smem, size = 0x4, offset = 0x4, fixed_abs, tag = 'smem constant byte address 0x4 - core index']
  #allocation1 [shape = 'u32[144,128]{1,0:T(1,128)}', space=vmem, size = 0x12000, scoped, tag = 'internal scratch']
  %s0 = inlined_call_operand.vmem [shape: bf16[8,16,256], index: 0, kind: input, shape index: {}]
  %s1 = inlined_call_operand.vmem [shape: s32[2,1024], index: 1, kind: input, shape index: {}]
  %s2 = inlined_call_operand.vmem [shape: bf16[8,16], index: 2, kind: input, shape index: {}]
  %s3 = inlined_call_operand.vmem [shape: f32[8,1], index: 3, kind: input, shape index: {}]
  %s4 = inlined_call_operand.vmem [shape: f32[8,1], index: 4, kind: input, shape index: {}]
  %s5 = inlined_call_operand.vmem [shape: bf16[8,72], index: 5, kind: input, shape index: {}]
  %s6 = inlined_call_operand.vmem [shape: f32[8,1], index: 6, kind: input, shape index: {}]
  %s7 = inlined_call_operand.vmem [shape: f32[8,1], index: 7, kind: input, shape index: {}]
  %s8 = inlined_call_operand.vmem [shape: bf16[32,8], index: 8, kind: input, shape index: {}]
  %s9 = inlined_call_operand.vmem [shape: f32[32,1], index: 9, kind: input, shape index: {}]
  %s10 = inlined_call_operand.vmem [shape: f32[32,1], index: 10, kind: input, shape index: {}]
  %s11 = inlined_call_operand.vmem [shape: bf16[32,16], index: 11, kind: input, shape index: {}]
  %s12 = inlined_call_operand.vmem [shape: f32[32,1], index: 12, kind: input, shape index: {}]
  %s13 = inlined_call_operand.vmem [shape: f32[32,1], index: 13, kind: input, shape index: {}]
  %s14 = inlined_call_operand.vmem [shape: f32[8,32,256], index: 14, kind: output, shape index: {}]
  %s15 = sld [smem:[#allocation0]]
  $region89: #{bottleneck_forward.1} parent=0
    _
  %s17 = ssub.s32 1, %s15
  %s18 = scalar_select 0, %s17, %s15
  loop: start=0, step=1, limit=4
  $region2: #{bottleneck_forward.1} parent=0 // loop_pre_header
    _
  $region3: #{bottleneck_forward.1} parent=0 // loop_header
    %s20 = sphi 0, %s24
    %p21 = scmp.ge.s32.totalorder %s20, 4
    %s30 = sphi 0, %s32
    %s33 = sphi 0, %s30
    %s34 = sphi 0, %s33
    %s50 = sphi 0, %s34
    %s54 = sphi 0, %s54
    %s56 = sphi 0, %s54
    %s57 = sphi 0, %s56
    %s71 = sphi 0, %s57
    %s75 = sphi 0, %s75
    %s77 = sphi 0, %s75
    %s78 = sphi 0, %s77
    %s92 = sphi 0, %s78
    %s96 = sphi 0, %s96
    %s98 = sphi 0, %s96
    %s99 = sphi 0, %s98
    %s113 = sphi 0, %s99
    %s117 = sphi 0, %s117
    %s119 = sphi 0, %s117
    %s120 = sphi 0, %s119
    %s134 = sphi 0, %s120
    %s138 = sphi 0, %s138
    %s140 = sphi 0, %s138
    %s141 = sphi 0, %s140
    %s155 = sphi 0, %s141
    %s159 = sphi 0, %s159
    %s161 = sphi 0, %s159
    %s162 = sphi 0, %s161
    %s176 = sphi 0, %s162
    %s180 = sphi 0, %s180
    %s182 = sphi 0, %s180
    %s183 = sphi 0, %s182
    %s197 = sphi 0, %s183
    %s201 = sphi 0, %s201
    %s203 = sphi 0, %s201
    %s204 = sphi 0, %s203
    %s218 = sphi 0, %s204
    %s222 = sphi 0, %s222
    %s224 = sphi 0, %s222
    %s225 = sphi 0, %s224
    %s239 = sphi 0, %s225
    %s243 = sphi 0, %s243
    %s245 = sphi 0, %s243
    %s246 = sphi 0, %s245
    %s260 = sphi 0, %s246
    %s264 = sphi 0, %s264
    %s266 = sphi 0, %s264
    %s267 = sphi 0, %s266
    %s281 = sphi 0, %s267
    %s285 = sphi 0, %s285
    %s287 = sphi 0, %s285
    %s288 = sphi 0, %s287
    %s302 = sphi 0, %s288
    %s306 = sphi 0, %s306
    %s308 = sphi 0, %s306
    %s309 = sphi 0, %s308
    %s323 = sphi 0, %s309
    %s329 = sphi 0, %s331
    %s332 = sphi 0, %s329
    %s333 = sphi 0, %s332
    %s349 = sphi 0, %s333
  $region4: #{bottleneck_forward.1} parent=0 // loop_header_branch
    %23 = sbr.rel (%p21) target = $region8
  $region5: #{bottleneck_forward.1} parent=0 // loop_body
    %s25 = ssub.s32 %s20, 1
    %s26 = ssub.s32 %s20, 2
    %s27 = sadd.s32 %s20, 1
    %s28 = ssub.s32 %s20, %s27
    %p29 = scmp.eq.s32.totalorder %s28, 0
    %s31 = sadd.s32 %s30, 1
    %s32 = scalar_select %p29, %s30, %s31
    %p35 = pneg %p29
    %p36 = scmp.eq.s32.totalorder %s20, 1
    %p37 = por %p35, %p36
    %p38 = scmp.ne.s32.totalorder %s30, %s33
    %p39 = scmp.eq.s32.totalorder %s20, 0
    %p40 = por %p38, %p39
    %p41 = scmp.ne.s32.totalorder %s30, %s33
    %p42 = scmp.eq.s32.totalorder %s25, 1
    %p43 = por %p41, %p42
    %p44 = scmp.ne.s32.totalorder %s33, %s34
    %p45 = scmp.eq.s32.totalorder %s25, 0
    %p46 = por %p44, %p45
    %p47 = scmp.ne.s32.totalorder %s33, %s34
    %p48 = scmp.eq.s32.totalorder %s26, 1
    %p49 = por %p47, %p48
    %p51 = scmp.ne.s32.totalorder %s34, %s50
    %p52 = scmp.eq.s32.totalorder %s26, 0
    %p53 = por %p51, %p52
    %s55 = sadd.s32 %s54, 1
    %p58 = scmp.eq.s32.totalorder %s20, 1
    %p59 = scmp.ne.s32.totalorder %s54, %s56
    %p60 = scmp.eq.s32.totalorder %s20, 0
    %p61 = por %p59, %p60
    %p62 = scmp.ne.s32.totalorder %s54, %s56
    %p63 = scmp.eq.s32.totalorder %s25, 1
    %p64 = por %p62, %p63
    %p65 = scmp.ne.s32.totalorder %s56, %s57
    %p66 = scmp.eq.s32.totalorder %s25, 0
    %p67 = por %p65, %p66
    %p68 = scmp.ne.s32.totalorder %s56, %s57
    %p69 = scmp.eq.s32.totalorder %s26, 1
    %p70 = por %p68, %p69
    %p72 = scmp.ne.s32.totalorder %s57, %s71
    %p73 = scmp.eq.s32.totalorder %s26, 0
    %p74 = por %p72, %p73
    %s76 = sadd.s32 %s75, 1
    %p79 = scmp.eq.s32.totalorder %s20, 1
    %p80 = scmp.ne.s32.totalorder %s75, %s77
    %p81 = scmp.eq.s32.totalorder %s20, 0
    %p82 = por %p80, %p81
    %p83 = scmp.ne.s32.totalorder %s75, %s77
    %p84 = scmp.eq.s32.totalorder %s25, 1
    %p85 = por %p83, %p84
    %p86 = scmp.ne.s32.totalorder %s77, %s78
    %p87 = scmp.eq.s32.totalorder %s25, 0
    %p88 = por %p86, %p87
    %p89 = scmp.ne.s32.totalorder %s77, %s78
    %p90 = scmp.eq.s32.totalorder %s26, 1
    %p91 = por %p89, %p90
    %p93 = scmp.ne.s32.totalorder %s78, %s92
    %p94 = scmp.eq.s32.totalorder %s26, 0
    %p95 = por %p93, %p94
    %s97 = sadd.s32 %s96, 1
    %p100 = scmp.eq.s32.totalorder %s20, 1
    %p101 = scmp.ne.s32.totalorder %s96, %s98
    %p102 = scmp.eq.s32.totalorder %s20, 0
    %p103 = por %p101, %p102
    %p104 = scmp.ne.s32.totalorder %s96, %s98
    %p105 = scmp.eq.s32.totalorder %s25, 1
    %p106 = por %p104, %p105
    %p107 = scmp.ne.s32.totalorder %s98, %s99
    %p108 = scmp.eq.s32.totalorder %s25, 0
    %p109 = por %p107, %p108
    %p110 = scmp.ne.s32.totalorder %s98, %s99
    %p111 = scmp.eq.s32.totalorder %s26, 1
    %p112 = por %p110, %p111
    %p114 = scmp.ne.s32.totalorder %s99, %s113
    %p115 = scmp.eq.s32.totalorder %s26, 0
    %p116 = por %p114, %p115
    %s118 = sadd.s32 %s117, 1
    %p121 = scmp.eq.s32.totalorder %s20, 1
    %p122 = scmp.ne.s32.totalorder %s117, %s119
    %p123 = scmp.eq.s32.totalorder %s20, 0
    %p124 = por %p122, %p123
    %p125 = scmp.ne.s32.totalorder %s117, %s119
    %p126 = scmp.eq.s32.totalorder %s25, 1
    %p127 = por %p125, %p126
    %p128 = scmp.ne.s32.totalorder %s119, %s120
    %p129 = scmp.eq.s32.totalorder %s25, 0
    %p130 = por %p128, %p129
    %p131 = scmp.ne.s32.totalorder %s119, %s120
    %p132 = scmp.eq.s32.totalorder %s26, 1
    %p133 = por %p131, %p132
    %p135 = scmp.ne.s32.totalorder %s120, %s134
    %p136 = scmp.eq.s32.totalorder %s26, 0
    %p137 = por %p135, %p136
    %s139 = sadd.s32 %s138, 1
    %p142 = scmp.eq.s32.totalorder %s20, 1
    %p143 = scmp.ne.s32.totalorder %s138, %s140
    %p144 = scmp.eq.s32.totalorder %s20, 0
    %p145 = por %p143, %p144
    %p146 = scmp.ne.s32.totalorder %s138, %s140
    %p147 = scmp.eq.s32.totalorder %s25, 1
    %p148 = por %p146, %p147
    %p149 = scmp.ne.s32.totalorder %s140, %s141
    %p150 = scmp.eq.s32.totalorder %s25, 0
    %p151 = por %p149, %p150
    %p152 = scmp.ne.s32.totalorder %s140, %s141
    %p153 = scmp.eq.s32.totalorder %s26, 1
    %p154 = por %p152, %p153
    %p156 = scmp.ne.s32.totalorder %s141, %s155
    %p157 = scmp.eq.s32.totalorder %s26, 0
    %p158 = por %p156, %p157
    %s160 = sadd.s32 %s159, 1
    %p163 = scmp.eq.s32.totalorder %s20, 1
    %p164 = scmp.ne.s32.totalorder %s159, %s161
    %p165 = scmp.eq.s32.totalorder %s20, 0
    %p166 = por %p164, %p165
    %p167 = scmp.ne.s32.totalorder %s159, %s161
    %p168 = scmp.eq.s32.totalorder %s25, 1
    %p169 = por %p167, %p168
    %p170 = scmp.ne.s32.totalorder %s161, %s162
    %p171 = scmp.eq.s32.totalorder %s25, 0
    %p172 = por %p170, %p171
    %p173 = scmp.ne.s32.totalorder %s161, %s162
    %p174 = scmp.eq.s32.totalorder %s26, 1
    %p175 = por %p173, %p174
    %p177 = scmp.ne.s32.totalorder %s162, %s176
    %p178 = scmp.eq.s32.totalorder %s26, 0
    %p179 = por %p177, %p178
    %s181 = sadd.s32 %s180, 1
    %p184 = scmp.eq.s32.totalorder %s20, 1
    %p185 = scmp.ne.s32.totalorder %s180, %s182
    %p186 = scmp.eq.s32.totalorder %s20, 0
    %p187 = por %p185, %p186
    %p188 = scmp.ne.s32.totalorder %s180, %s182
    %p189 = scmp.eq.s32.totalorder %s25, 1
    %p190 = por %p188, %p189
    %p191 = scmp.ne.s32.totalorder %s182, %s183
    %p192 = scmp.eq.s32.totalorder %s25, 0
    %p193 = por %p191, %p192
    %p194 = scmp.ne.s32.totalorder %s182, %s183
    %p195 = scmp.eq.s32.totalorder %s26, 1
    %p196 = por %p194, %p195
    %p198 = scmp.ne.s32.totalorder %s183, %s197
    %p199 = scmp.eq.s32.totalorder %s26, 0
    %p200 = por %p198, %p199
    %s202 = sadd.s32 %s201, 1
    %p205 = scmp.eq.s32.totalorder %s20, 1
    %p206 = scmp.ne.s32.totalorder %s201, %s203
    %p207 = scmp.eq.s32.totalorder %s20, 0
    %p208 = por %p206, %p207
    %p209 = scmp.ne.s32.totalorder %s201, %s203
    %p210 = scmp.eq.s32.totalorder %s25, 1
    %p211 = por %p209, %p210
    %p212 = scmp.ne.s32.totalorder %s203, %s204
    %p213 = scmp.eq.s32.totalorder %s25, 0
    %p214 = por %p212, %p213
    %p215 = scmp.ne.s32.totalorder %s203, %s204
    %p216 = scmp.eq.s32.totalorder %s26, 1
    %p217 = por %p215, %p216
    %p219 = scmp.ne.s32.totalorder %s204, %s218
    %p220 = scmp.eq.s32.totalorder %s26, 0
    %p221 = por %p219, %p220
    %s223 = sadd.s32 %s222, 1
    %p226 = scmp.eq.s32.totalorder %s20, 1
    %p227 = scmp.ne.s32.totalorder %s222, %s224
    %p228 = scmp.eq.s32.totalorder %s20, 0
    %p229 = por %p227, %p228
    %p230 = scmp.ne.s32.totalorder %s222, %s224
    %p231 = scmp.eq.s32.totalorder %s25, 1
    %p232 = por %p230, %p231
    %p233 = scmp.ne.s32.totalorder %s224, %s225
    %p234 = scmp.eq.s32.totalorder %s25, 0
    %p235 = por %p233, %p234
    %p236 = scmp.ne.s32.totalorder %s224, %s225
    %p237 = scmp.eq.s32.totalorder %s26, 1
    %p238 = por %p236, %p237
    %p240 = scmp.ne.s32.totalorder %s225, %s239
    %p241 = scmp.eq.s32.totalorder %s26, 0
    %p242 = por %p240, %p241
    %s244 = sadd.s32 %s243, 1
    %p247 = scmp.eq.s32.totalorder %s20, 1
    %p248 = scmp.ne.s32.totalorder %s243, %s245
    %p249 = scmp.eq.s32.totalorder %s20, 0
    %p250 = por %p248, %p249
    %p251 = scmp.ne.s32.totalorder %s243, %s245
    %p252 = scmp.eq.s32.totalorder %s25, 1
    %p253 = por %p251, %p252
    %p254 = scmp.ne.s32.totalorder %s245, %s246
    %p255 = scmp.eq.s32.totalorder %s25, 0
    %p256 = por %p254, %p255
    %p257 = scmp.ne.s32.totalorder %s245, %s246
    %p258 = scmp.eq.s32.totalorder %s26, 1
    %p259 = por %p257, %p258
    %p261 = scmp.ne.s32.totalorder %s246, %s260
    %p262 = scmp.eq.s32.totalorder %s26, 0
    %p263 = por %p261, %p262
    %s265 = sadd.s32 %s264, 1
    %p268 = scmp.eq.s32.totalorder %s20, 1
    %p269 = scmp.ne.s32.totalorder %s264, %s266
    %p270 = scmp.eq.s32.totalorder %s20, 0
    %p271 = por %p269, %p270
    %p272 = scmp.ne.s32.totalorder %s264, %s266
    %p273 = scmp.eq.s32.totalorder %s25, 1
    %p274 = por %p272, %p273
    %p275 = scmp.ne.s32.totalorder %s266, %s267
    %p276 = scmp.eq.s32.totalorder %s25, 0
    %p277 = por %p275, %p276
    %p278 = scmp.ne.s32.totalorder %s266, %s267
    %p279 = scmp.eq.s32.totalorder %s26, 1
    %p280 = por %p278, %p279
    %p282 = scmp.ne.s32.totalorder %s267, %s281
    %p283 = scmp.eq.s32.totalorder %s26, 0
    %p284 = por %p282, %p283
    %s286 = sadd.s32 %s285, 1
    %p289 = scmp.eq.s32.totalorder %s20, 1
    %p290 = scmp.ne.s32.totalorder %s285, %s287
    %p291 = scmp.eq.s32.totalorder %s20, 0
    %p292 = por %p290, %p291
    %p293 = scmp.ne.s32.totalorder %s285, %s287
    %p294 = scmp.eq.s32.totalorder %s25, 1
    %p295 = por %p293, %p294
    %p296 = scmp.ne.s32.totalorder %s287, %s288
    %p297 = scmp.eq.s32.totalorder %s25, 0
    %p298 = por %p296, %p297
    %p299 = scmp.ne.s32.totalorder %s287, %s288
    %p300 = scmp.eq.s32.totalorder %s26, 1
    %p301 = por %p299, %p300
    %p303 = scmp.ne.s32.totalorder %s288, %s302
    %p304 = scmp.eq.s32.totalorder %s26, 0
    %p305 = por %p303, %p304
    %s307 = sadd.s32 %s306, 1
    %p310 = scmp.eq.s32.totalorder %s20, 1
    %p311 = scmp.ne.s32.totalorder %s306, %s308
    %p312 = scmp.eq.s32.totalorder %s20, 0
    %p313 = por %p311, %p312
    %p314 = scmp.ne.s32.totalorder %s306, %s308
    %p315 = scmp.eq.s32.totalorder %s25, 1
    %p316 = por %p314, %p315
    %p317 = scmp.ne.s32.totalorder %s308, %s309
    %p318 = scmp.eq.s32.totalorder %s25, 0
    %p319 = por %p317, %p318
    %p320 = scmp.ne.s32.totalorder %s308, %s309
    %p321 = scmp.eq.s32.totalorder %s26, 1
    %p322 = por %p320, %p321
    %p324 = scmp.ne.s32.totalorder %s309, %s323
    %p325 = scmp.eq.s32.totalorder %s26, 0
    %p326 = por %p324, %p325
    %s327 = ssub.s32 %s20, %s27
    %p328 = scmp.eq.s32.totalorder %s327, 0
    %s330 = sadd.s32 %s329, 1
    %s331 = scalar_select %p328, %s329, %s330
    %p334 = pneg %p328
    %p335 = scmp.eq.s32.totalorder %s20, 1
    %p336 = por %p334, %p335
    %p337 = scmp.ne.s32.totalorder %s329, %s332
    %p338 = scmp.eq.s32.totalorder %s20, 0
    %p339 = por %p337, %p338
    %p340 = scmp.ne.s32.totalorder %s329, %s332
    %p341 = scmp.eq.s32.totalorder %s25, 1
    %p342 = por %p340, %p341
    %p343 = scmp.ne.s32.totalorder %s332, %s333
    %p344 = scmp.eq.s32.totalorder %s25, 0
    %p345 = por %p343, %p344
    %p346 = scmp.ne.s32.totalorder %s332, %s333
    %p347 = scmp.eq.s32.totalorder %s26, 1
    %p348 = por %p346, %p347
    %p350 = scmp.ne.s32.totalorder %s333, %s349
    %p351 = scmp.eq.s32.totalorder %s26, 0
    %p352 = por %p350, %p351
    %p353 = scmp.le.s32.totalorder 1, %s20
    %p354 = scmp.lt.s32.totalorder %s20, 3
    %p355 = pnand %p353, %p354
    %p356 = pneg %p355
    // Predicated region
    $region9: #{bottleneck_forward.1} parent=5 // pred_check
      _
    $region10: #{bottleneck_forward.1} parent=5 // pred_check_branch
      %358 = sbr.rel (%p355) target = $region12
    $region11: #{bottleneck_forward.1} parent=5 // pred_region
      %s359 = ssub.s32 %s20, 1
      // Predicated region
      $region13: #{bottleneck_forward.1} parent=11 // pred_check
        %p360 = pneg %p67
      $region14: #{bottleneck_forward.1} parent=11 // pred_check_branch
        %362 = sbr.rel (%p360) target = $region16
      $region15: #{bottleneck_forward.1} parent=11 // pred_region
        _
      $region16: #{bottleneck_forward.1} parent=11 // pred_fallthru
        _
      // Predicated region
      $region17: #{bottleneck_forward.1} parent=11 // pred_check
        %p363 = pneg %p88
      $region18: #{bottleneck_forward.1} parent=11 // pred_check_branch
        %365 = sbr.rel (%p363) target = $region20
      $region19: #{bottleneck_forward.1} parent=11 // pred_region
        _
      $region20: #{bottleneck_forward.1} parent=11 // pred_fallthru
        _
      // Predicated region
      $region21: #{bottleneck_forward.1} parent=11 // pred_check
        %p366 = pneg %p109
      $region22: #{bottleneck_forward.1} parent=11 // pred_check_branch
        %368 = sbr.rel (%p366) target = $region24
      $region23: #{bottleneck_forward.1} parent=11 // pred_region
        _
      $region24: #{bottleneck_forward.1} parent=11 // pred_fallthru
        _
      // Predicated region
      $region25: #{bottleneck_forward.1} parent=11 // pred_check
        %p369 = pneg %p130
      $region26: #{bottleneck_forward.1} parent=11 // pred_check_branch
        %371 = sbr.rel (%p369) target = $region28
      $region27: #{bottleneck_forward.1} parent=11 // pred_region
        _
      $region28: #{bottleneck_forward.1} parent=11 // pred_fallthru
        _
      // Predicated region
      $region29: #{bottleneck_forward.1} parent=11 // pred_check
        %p372 = pneg %p151
      $region30: #{bottleneck_forward.1} parent=11 // pred_check_branch
        %374 = sbr.rel (%p372) target = $region32
      $region31: #{bottleneck_forward.1} parent=11 // pred_region
        _
      $region32: #{bottleneck_forward.1} parent=11 // pred_fallthru
        _
      // Predicated region
      $region33: #{bottleneck_forward.1} parent=11 // pred_check
        %p375 = pneg %p172
      $region34: #{bottleneck_forward.1} parent=11 // pred_check_branch
        %377 = sbr.rel (%p375) target = $region36
      $region35: #{bottleneck_forward.1} parent=11 // pred_region
        _
      $region36: #{bottleneck_forward.1} parent=11 // pred_fallthru
        _
      // Predicated region
      $region37: #{bottleneck_forward.1} parent=11 // pred_check
        %p378 = pneg %p193
      $region38: #{bottleneck_forward.1} parent=11 // pred_check_branch
        %380 = sbr.rel (%p378) target = $region40
      $region39: #{bottleneck_forward.1} parent=11 // pred_region
        _
      $region40: #{bottleneck_forward.1} parent=11 // pred_fallthru
        _
      // Predicated region
      $region41: #{bottleneck_forward.1} parent=11 // pred_check
        %p381 = pneg %p214
      $region42: #{bottleneck_forward.1} parent=11 // pred_check_branch
        %383 = sbr.rel (%p381) target = $region44
      $region43: #{bottleneck_forward.1} parent=11 // pred_region
        _
      $region44: #{bottleneck_forward.1} parent=11 // pred_fallthru
        _
      // Predicated region
      $region45: #{bottleneck_forward.1} parent=11 // pred_check
        %p384 = pneg %p235
      $region46: #{bottleneck_forward.1} parent=11 // pred_check_branch
        %386 = sbr.rel (%p384) target = $region48
      $region47: #{bottleneck_forward.1} parent=11 // pred_region
        _
      $region48: #{bottleneck_forward.1} parent=11 // pred_fallthru
        _
      // Predicated region
      $region49: #{bottleneck_forward.1} parent=11 // pred_check
        %p387 = pneg %p256
      $region50: #{bottleneck_forward.1} parent=11 // pred_check_branch
        %389 = sbr.rel (%p387) target = $region52
      $region51: #{bottleneck_forward.1} parent=11 // pred_region
        _
      $region52: #{bottleneck_forward.1} parent=11 // pred_fallthru
        _
      // Predicated region
      $region53: #{bottleneck_forward.1} parent=11 // pred_check
        %p390 = pneg %p277
      $region54: #{bottleneck_forward.1} parent=11 // pred_check_branch
        %392 = sbr.rel (%p390) target = $region56
      $region55: #{bottleneck_forward.1} parent=11 // pred_region
        _
      $region56: #{bottleneck_forward.1} parent=11 // pred_fallthru
        _
      // Predicated region
      $region57: #{bottleneck_forward.1} parent=11 // pred_check
        %p393 = pneg %p298
      $region58: #{bottleneck_forward.1} parent=11 // pred_check_branch
        %395 = sbr.rel (%p393) target = $region60
      $region59: #{bottleneck_forward.1} parent=11 // pred_region
        _
      $region60: #{bottleneck_forward.1} parent=11 // pred_fallthru
        _
      // Predicated region
      $region61: #{bottleneck_forward.1} parent=11 // pred_check
        %p396 = pneg %p319
      $region62: #{bottleneck_forward.1} parent=11 // pred_check_branch
        %398 = sbr.rel (%p396) target = $region64
      $region63: #{bottleneck_forward.1} parent=11 // pred_region
        _
      $region64: #{bottleneck_forward.1} parent=11 // pred_fallthru
        _
    $region12: #{bottleneck_forward.1} parent=5 // pred_fallthru
      _
    %p399 = scmp.lt.s32.totalorder %s20, 2
    // Predicated region
    $region65: #{bottleneck_forward.1} parent=5 // pred_check
      %p400 = pneg %p399
    $region66: #{bottleneck_forward.1} parent=5 // pred_check_branch
      %402 = sbr.rel (%p400) target = $region68
    $region67: #{bottleneck_forward.1} parent=5 // pred_region
      // Predicated region
      $region69: #{bottleneck_forward.1} parent=67 // pred_check
        %p403 = pneg %p40
      $region70: #{bottleneck_forward.1} parent=67 // pred_check_branch
        %405 = sbr.rel (%p403) target = $region72
      $region71: #{bottleneck_forward.1} parent=67 // pred_region
        %s406 = smul.u32 4, %s20
        %p407 = scmp.lt.s32.totalorder %s406, 7
        %s408 = scalar_select %p407, %s406, 7
        %s409 = smul.addr %s408, 4
        %s410 = smul.addr %s409, 4
        %s411 = scalar_lea.vmem %s0, %s410
        %s412 = smul.u32 4, %s20
      $region72: #{bottleneck_forward.1} parent=67 // pred_fallthru
        _
    $region68: #{bottleneck_forward.1} parent=5 // pred_fallthru
      _
    %p413 = scmp.le.s32.totalorder 1, %s20
    %p414 = scmp.lt.s32.totalorder %s20, 3
    %p415 = pnand %p413, %p414
    %p416 = pneg %p415
    // Predicated region
    $region73: #{bottleneck_forward.1} parent=5 // pred_check
      _
    $region74: #{bottleneck_forward.1} parent=5 // pred_check_branch
      %418 = sbr.rel (%p415) target = $region76
    $region75: #{bottleneck_forward.1} parent=5 // pred_region
      %s419 = ssub.s32 %s20, 1
      %s420 = smul.u32 4, %s25
      %p421 = scmp.lt.s32.totalorder %s420, 7
      %s422 = scalar_select %p421, %s420, 7
      %s423 = smul.addr %s422, 4
      %s424 = smul.addr %s423, 4
      %s425 = scalar_lea.vmem %s0, %s424
      %p426 = pneg %p46
      %p427 = pneg %p43
      %p428 = pneg %p67
      %p429 = pneg %p64
      %p430 = pneg %p88
      %p431 = pneg %p85
      %p432 = pneg %p109
      %p433 = pneg %p106
      %p434 = pneg %p130
      %p435 = pneg %p127
      %p436 = pneg %p151
      %p437 = pneg %p148
      %p438 = pneg %p172
      %p439 = pneg %p169
      %p440 = pneg %p193
      %p441 = pneg %p190
      %p442 = pneg %p214
      %p443 = pneg %p211
      %p444 = pneg %p235
      %p445 = pneg %p232
      %p446 = pneg %p256
      %p447 = pneg %p253
      %p448 = pneg %p277
      %p449 = pneg %p274
      %p450 = pneg %p298
      %p451 = pneg %p295
      %p452 = pneg %p319
      %p453 = pneg %p316
      %p454 = pneg %p345
      %p455 = pneg %p342
      %s456 = smul.u32 4, %s25
      %p457 = scmp.lt.s32.totalorder %s456, 7
      %s458 = scalar_select %p457, %s456, 7
      %s459 = smul.addr %s458, 8
      %s460 = smul.addr %s459, 8
      %s461 = scalar_lea.vmem %s14, %s460
      %s462 = smul.u32 4, %s25
      %p463 = scmp.lt.s32.totalorder %s462, 7
      %s464 = scalar_select %p463, %s462, 7
      %s465 = smul.addr %s464, 4
      %s466 = smul.addr %s465, 4
      %s467 = scalar_lea.vmem %s0, %s466
      %s468 = smul.u32 4, %s25
      %s469 = smul.u32 4, %s25
      %p470 = scmp.lt.s32.totalorder %s469, 7
      %s471 = scalar_select %p470, %s469, 7
      %s472 = smul.addr %s471, 8
      %s473 = smul.addr %s472, 8
      %s474 = scalar_lea.vmem %s14, %s473
      %s475 = smul.u32 4, %s25
      %v477 = vld [vmem:[%s2] sm:$0xf]
      %v478 = vld [vmem:[%s5] sm:$0xf]
      %v479 = vld [vmem:[%s8] sm:$0xf]
      %v480 = vld [vmem:[%s8 + $0x4] sm:$0xf]
      %v481 = vld [vmem:[%s8 + $0x8] sm:$0xf]
      %v482 = vld [vmem:[%s8 + $0xc] sm:$0xf]
      %v483 = vld [vmem:[%s3] sm:$0xff]
      %v484 = vld [vmem:[%s4] sm:$0xff]
      %v485 = vld [vmem:[%s6] sm:$0xff]
      %v486 = vld [vmem:[%s7] sm:$0xff]
      %v487 = vld [vmem:[%s9] sm:$0xff]
      %v488 = vld [vmem:[%s9 + $0x8] sm:$0xff]
      %v489 = vld [vmem:[%s9 + $0x10] sm:$0xff]
      %v490 = vld [vmem:[%s9 + $0x18] sm:$0xff]
      %v491 = vld [vmem:[%s10] sm:$0xff]
      %v492 = vld [vmem:[%s10 + $0x8] sm:$0xff]
      %v493 = vld [vmem:[%s10 + $0x10] sm:$0xff]
      %v494 = vld [vmem:[%s10 + $0x18] sm:$0xff]
      %v495 = vld [vmem:[%s1] ss:$2 sm:$0xff]
      %s496 = scalar_lea.vmem %s1, 1
      %v497 = vld [vmem:[%s496] ss:$2 sm:$0xff]
      %v498 = vld [vmem:[%s467] sm:$0xff]
      %v499 = vld [vmem:[%s467 + $0x8] sm:$0xff]
      %s500 = scalar_lea.vmem %s467, 16
      %v501 = vld [vmem:[%s500] sm:$0xff]
      %v502 = vld [vmem:[%s500 + $0x8] sm:$0xff]
      %s503 = scalar_lea.vmem %s467, 32
      %v504 = vld [vmem:[%s503] sm:$0xff]
      %v505 = vld [vmem:[%s503 + $0x8] sm:$0xff]
      %s506 = scalar_lea.vmem %s467, 48
      %v507 = vld [vmem:[%s506] sm:$0xff]
      %v508 = vld [vmem:[%s506 + $0x8] sm:$0xff]
      %v511 = vunpack.c.l.b16 %v498
      %v512 = vunpack.c.h.b16 %v498
      %v513 = vunpack.c.l.b16 %v499
      %v514 = vunpack.c.h.b16 %v499
      %v515 = vpack.c.b16 %v513, %v511
      %v516 = vpack.c.b16 %v514, %v512
      %v521 = vunpack.c.l.b16 %v501
      %v522 = vunpack.c.h.b16 %v501
      %v523 = vunpack.c.l.b16 %v502
      %v524 = vunpack.c.h.b16 %v502
      %v525 = vpack.c.b16 %v523, %v521
      %v526 = vpack.c.b16 %v524, %v522
      %v531 = vunpack.c.l.b16 %v504
      %v532 = vunpack.c.h.b16 %v504
      %v533 = vunpack.c.l.b16 %v505
      %v534 = vunpack.c.h.b16 %v505
      %v535 = vpack.c.b16 %v533, %v531
      %v536 = vpack.c.b16 %v534, %v532
      %v541 = vunpack.c.l.b16 %v507
      %v542 = vunpack.c.h.b16 %v507
      %v543 = vunpack.c.l.b16 %v508
      %v544 = vunpack.c.h.b16 %v508
      %v545 = vpack.c.b16 %v543, %v541
      %v546 = vpack.c.b16 %v544, %v542
      %vm549 = vcmask 130048
      %v551 = vsel %vm549, %v477, 0
      %553 = vmatprep.subr.bf16.mxu0 %v516
      %554 = vmatpush1.bf16.msra.mxu0 %v515
      %555 = vmatprep.subr.bf16.mxu0 0
      %556 = vmatpush1.bf16.msra.mxu0 0
      %557 = vmatprep.subr.bf16.mxu0 0
      %558 = vmatpush1.bf16.msra.mxu0 0
      %559 = vmatprep.subr.bf16.mxu0 0
      %560 = vmatpush1.bf16.msra.mxu0 0
      %561 = vmatprep.subr.bf16.mxu0 0
      %562 = vmatpush1.bf16.msra.mxu0 0
      %563 = vmatprep.subr.bf16.mxu0 0
      %564 = vmatpush1.bf16.msra.mxu0 0
      %565 = vmatprep.subr.bf16.mxu0 0
      %566 = vmatpush1.bf16.msra.mxu0 0
      %567 = vmatprep.subr.bf16.mxu0 0
      %568 = vmatpush1.bf16.msra.mxu0 0
      %569 = vmatprep.subr.bf16.mxu0 0
      %570 = vmatpush1.bf16.msra.mxu0 0
      %571 = vmatprep.subr.bf16.mxu0 0
      %572 = vmatpush1.bf16.msra.mxu0 0
      %573 = vmatprep.subr.bf16.mxu0 0
      %574 = vmatpush1.bf16.msra.mxu0 0
      %575 = vmatprep.subr.bf16.mxu0 0
      %576 = vmatpush1.bf16.msra.mxu0 0
      %577 = vmatprep.subr.bf16.mxu0 0
      %578 = vmatpush1.bf16.msra.mxu0 0
      %579 = vmatprep.subr.bf16.mxu0 0
      %580 = vmatpush1.bf16.msra.mxu0 0
      %581 = vmatprep.subr.bf16.mxu0 0
      %582 = vmatpush1.bf16.msra.mxu0 0
      %583 = vmatprep.subr.bf16.mxu0 0
      %584 = vmatpush1.bf16.msra.mxu0 0
      %585 = vmatprep.mubr.bf16.mxu0 0
      %586 = vmatmul.mubr.bf16.gmra.mrb[0].mxu0 %v551
      %v587 = vpop.f32.mrb[0].mxu0
      %v588 = vadd.f32 0.0, %v587
      %v589 = vpop.f32.mrb[0].mxu0
      %v590 = vadd.f32 0.0, %v589
      %v591 = vpop.f32.mrb[0].mxu0
      %v592 = vpop.f32.mrb[0].mxu0
      %593 = vdwg.mxu0
      %594 = vmatprep.subr.bf16.mxu0 %v526
      %595 = vmatpush1.bf16.msra.mxu0 %v525
      %596 = vmatprep.subr.bf16.mxu0 0
      %597 = vmatpush1.bf16.msra.mxu0 0
      %598 = vmatprep.subr.bf16.mxu0 0
      %599 = vmatpush1.bf16.msra.mxu0 0
      %600 = vmatprep.subr.bf16.mxu0 0
      %601 = vmatpush1.bf16.msra.mxu0 0
      %602 = vmatprep.subr.bf16.mxu0 0
      %603 = vmatpush1.bf16.msra.mxu0 0
      %604 = vmatprep.subr.bf16.mxu0 0
      %605 = vmatpush1.bf16.msra.mxu0 0
      %606 = vmatprep.subr.bf16.mxu0 0
      %607 = vmatpush1.bf16.msra.mxu0 0
      %608 = vmatprep.subr.bf16.mxu0 0
      %609 = vmatpush1.bf16.msra.mxu0 0
      %610 = vmatprep.subr.bf16.mxu0 0
      %611 = vmatpush1.bf16.msra.mxu0 0
      %612 = vmatprep.subr.bf16.mxu0 0
      %613 = vmatpush1.bf16.msra.mxu0 0
      %614 = vmatprep.subr.bf16.mxu0 0
      %615 = vmatpush1.bf16.msra.mxu0 0
      %616 = vmatprep.subr.bf16.mxu0 0
      %617 = vmatpush1.bf16.msra.mxu0 0
      %618 = vmatprep.subr.bf16.mxu0 0
      %619 = vmatpush1.bf16.msra.mxu0 0
      %620 = vmatprep.subr.bf16.mxu0 0
      %621 = vmatpush1.bf16.msra.mxu0 0
      %622 = vmatprep.subr.bf16.mxu0 0
      %623 = vmatpush1.bf16.msra.mxu0 0
      %624 = vmatprep.subr.bf16.mxu0 0
      %625 = vmatpush1.bf16.msra.mxu0 0
      %626 = vmatprep.mubr.bf16.mxu0 0
      %627 = vmatmul.mubr.bf16.gmra.mrb[0].mxu0 %v551
      %v628 = vpop.f32.mrb[0].mxu0
      %v629 = vadd.f32 0.0, %v628
      %v630 = vpop.f32.mrb[0].mxu0
      %v631 = vadd.f32 0.0, %v630
      %v632 = vpop.f32.mrb[0].mxu0
      %v633 = vpop.f32.mrb[0].mxu0
      %634 = vdwg.mxu0
      %635 = vmatprep.subr.bf16.mxu0 %v536
      %636 = vmatpush1.bf16.msra.mxu0 %v535
      %637 = vmatprep.subr.bf16.mxu0 0
      %638 = vmatpush1.bf16.msra.mxu0 0
      %639 = vmatprep.subr.bf16.mxu0 0
      %640 = vmatpush1.bf16.msra.mxu0 0
      %641 = vmatprep.subr.bf16.mxu0 0
      %642 = vmatpush1.bf16.msra.mxu0 0
      %643 = vmatprep.subr.bf16.mxu0 0
      %644 = vmatpush1.bf16.msra.mxu0 0
      %645 = vmatprep.subr.bf16.mxu0 0
      %646 = vmatpush1.bf16.msra.mxu0 0
      %647 = vmatprep.subr.bf16.mxu0 0
      %648 = vmatpush1.bf16.msra.mxu0 0
      %649 = vmatprep.subr.bf16.mxu0 0
      %650 = vmatpush1.bf16.msra.mxu0 0
      %651 = vmatprep.subr.bf16.mxu0 0
      %652 = vmatpush1.bf16.msra.mxu0 0
      %653 = vmatprep.subr.bf16.mxu0 0
      %654 = vmatpush1.bf16.msra.mxu0 0
      %655 = vmatprep.subr.bf16.mxu0 0
      %656 = vmatpush1.bf16.msra.mxu0 0
      %657 = vmatprep.subr.bf16.mxu0 0
      %658 = vmatpush1.bf16.msra.mxu0 0
      %659 = vmatprep.subr.bf16.mxu0 0
      %660 = vmatpush1.bf16.msra.mxu0 0
      %661 = vmatprep.subr.bf16.mxu0 0
      %662 = vmatpush1.bf16.msra.mxu0 0
      %663 = vmatprep.subr.bf16.mxu0 0
      %664 = vmatpush1.bf16.msra.mxu0 0
      %665 = vmatprep.subr.bf16.mxu0 0
      %666 = vmatpush1.bf16.msra.mxu0 0
      %667 = vmatprep.mubr.bf16.mxu0 0
      %668 = vmatmul.mubr.bf16.gmra.mrb[0].mxu0 %v551
      %v669 = vpop.f32.mrb[0].mxu0
      %v670 = vadd.f32 0.0, %v669
      %v671 = vpop.f32.mrb[0].mxu0
      %v672 = vadd.f32 0.0, %v671
      %v673 = vpop.f32.mrb[0].mxu0
      %v674 = vpop.f32.mrb[0].mxu0
      %675 = vdwg.mxu0
      %676 = vmatprep.subr.bf16.mxu0 %v546
      %677 = vmatpush1.bf16.msra.mxu0 %v545
      %678 = vmatprep.subr.bf16.mxu0 0
      %679 = vmatpush1.bf16.msra.mxu0 0
      %680 = vmatprep.subr.bf16.mxu0 0
      %681 = vmatpush1.bf16.msra.mxu0 0
      %682 = vmatprep.subr.bf16.mxu0 0
      %683 = vmatpush1.bf16.msra.mxu0 0
      %684 = vmatprep.subr.bf16.mxu0 0
      %685 = vmatpush1.bf16.msra.mxu0 0
      %686 = vmatprep.subr.bf16.mxu0 0
      %687 = vmatpush1.bf16.msra.mxu0 0
      %688 = vmatprep.subr.bf16.mxu0 0
      %689 = vmatpush1.bf16.msra.mxu0 0
      %690 = vmatprep.subr.bf16.mxu0 0
      %691 = vmatpush1.bf16.msra.mxu0 0
      %692 = vmatprep.subr.bf16.mxu0 0
      %693 = vmatpush1.bf16.msra.mxu0 0
      %694 = vmatprep.subr.bf16.mxu0 0
      %695 = vmatpush1.bf16.msra.mxu0 0
      %696 = vmatprep.subr.bf16.mxu0 0
      %697 = vmatpush1.bf16.msra.mxu0 0
      %698 = vmatprep.subr.bf16.mxu0 0
      %699 = vmatpush1.bf16.msra.mxu0 0
      %700 = vmatprep.subr.bf16.mxu0 0
      %701 = vmatpush1.bf16.msra.mxu0 0
      %702 = vmatprep.subr.bf16.mxu0 0
      %703 = vmatpush1.bf16.msra.mxu0 0
      %704 = vmatprep.subr.bf16.mxu0 0
      %705 = vmatpush1.bf16.msra.mxu0 0
      %706 = vmatprep.subr.bf16.mxu0 0
      %707 = vmatpush1.bf16.msra.mxu0 0
      %708 = vmatprep.mubr.bf16.mxu0 0
      %709 = vmatmul.mubr.bf16.gmra.mrb[0].mxu0 %v551
      %v710 = vpop.f32.mrb[0].mxu0
      %v711 = vadd.f32 0.0, %v710
      %v712 = vpop.f32.mrb[0].mxu0
      %v713 = vadd.f32 0.0, %v712
      %v714 = vpop.f32.mrb[0].mxu0
      %v715 = vpop.f32.mrb[0].mxu0
      %716 = vdwg.mxu0
      %718 = vset.pattern.permute.xlu0 0
      %719 = vperm.xlu0 %718, %v483
      %v720 = vpop.permute.xlu0 %719
      %v722 = vmul.f32 %v588, %v720
      %v723 = vmul.f32 %v590, %v720
      %v724 = vmul.f32 %v629, %v720
      %v725 = vmul.f32 %v631, %v720
      %v726 = vmul.f32 %v670, %v720
      %v727 = vmul.f32 %v672, %v720
      %v728 = vmul.f32 %v711, %v720
      %v729 = vmul.f32 %v713, %v720
      %731 = vset.pattern.permute.xlu0 0
      %732 = vperm.xlu0 %731, %v484
      %v733 = vpop.permute.xlu0 %732
      %v735 = vadd.f32 %v722, %v733
      %v736 = vadd.f32 %v723, %v733
      %v737 = vadd.f32 %v724, %v733
      %v738 = vadd.f32 %v725, %v733
      %v739 = vadd.f32 %v726, %v733
      %v740 = vadd.f32 %v727, %v733
      %v741 = vadd.f32 %v728, %v733
      %v742 = vadd.f32 %v729, %v733
      %vm743 = vcmp.gt.f32.partialorder %v735, 0.0
      %vm744 = vcmp.gt.f32.partialorder %v736, 0.0
      %vm745 = vcmp.gt.f32.partialorder %v737, 0.0
      %vm746 = vcmp.gt.f32.partialorder %v738, 0.0
      %vm747 = vcmp.gt.f32.partialorder %v739, 0.0
      %vm748 = vcmp.gt.f32.partialorder %v740, 0.0
      %vm749 = vcmp.gt.f32.partialorder %v741, 0.0
      %vm750 = vcmp.gt.f32.partialorder %v742, 0.0
      %v751 = vmul.f32 %v735, 1.442695
      %v752 = vpow.pop %v751
      %v753 = vmul.f32 %v736, 1.442695
      %v754 = vpow.pop %v753
      %v755 = vmul.f32 %v737, 1.442695
      %v756 = vpow.pop %v755
      %v757 = vmul.f32 %v738, 1.442695
      %v758 = vpow.pop %v757
      %v759 = vmul.f32 %v739, 1.442695
      %v760 = vpow.pop %v759
      %v761 = vmul.f32 %v740, 1.442695
      %v762 = vpow.pop %v761
      %v763 = vmul.f32 %v741, 1.442695
      %v764 = vpow.pop %v763
      %v765 = vmul.f32 %v742, 1.442695
      %v766 = vpow.pop %v765
      %v767 = vsub.f32 %v752, 1.0
      %v768 = vsub.f32 %v754, 1.0
      %v769 = vsub.f32 %v756, 1.0
      %v770 = vsub.f32 %v758, 1.0
      %v771 = vsub.f32 %v760, 1.0
      %v772 = vsub.f32 %v762, 1.0
      %v773 = vsub.f32 %v764, 1.0
      %v774 = vsub.f32 %v766, 1.0
      %v775 = vsel %vm743, %v735, %v767
      %v776 = vsel %vm744, %v736, %v768
      %v777 = vsel %vm745, %v737, %v769
      %v778 = vsel %vm746, %v738, %v770
      %v779 = vsel %vm747, %v739, %v771
      %v780 = vsel %vm748, %v740, %v772
      %v781 = vsel %vm749, %v741, %v773
      %v782 = vsel %vm750, %v742, %v774
      %783 = vrot.lane.b32.xlu0 %v775, 17
      %v784 = vpop.permute.xlu0 %783
      %785 = vrot.lane.b32.xlu0 %v776, 17
      %v786 = vpop.permute.xlu0 %785
      %787 = vrot.lane.b32.xlu0 %v777, 17
      %v788 = vpop.permute.xlu0 %787
      %789 = vrot.lane.b32.xlu0 %v778, 17
      %v790 = vpop.permute.xlu0 %789
      %791 = vrot.lane.b32.xlu0 %v779, 17
      %v792 = vpop.permute.xlu0 %791
      %793 = vrot.lane.b32.xlu0 %v780, 17
      %v794 = vpop.permute.xlu0 %793
      %795 = vrot.lane.b32.xlu0 %v781, 17
      %v796 = vpop.permute.xlu0 %795
      %797 = vrot.lane.b32.xlu0 %v782, 17
      %v798 = vpop.permute.xlu0 %797
      %v799 = vlaneseq
      %v800 = vand.u32 %v799, 127
      %vm801 = vcmp.lt.s32.totalorder %v800, 17
      %v802 = vsel %vm801, %v796, %v798
      %v803 = vsel %vm801, %v794, %v796
      %v804 = vsel %vm801, %v792, %v794
      %v805 = vsel %vm801, %v790, %v792
      %v806 = vsel %vm801, %v788, %v790
      %v807 = vsel %vm801, %v786, %v788
      %v808 = vsel %vm801, %v784, %v786
      %v809 = vsel %vm801, %v798, %v784
      %vm810 = vcmp.ge.s32.totalorder %v495, 1
      %vm811 = vcmp.ge.s32.totalorder %v497, 1
      %vm812 = vmand %vm810, %vm811
      %v813 = vsel %vm812, 1, 0
      %v814 = vlaneseq
      %v815 = vshrl.u32 %v814, 7
      %v816 = vsub.s32 0, %v815
      %v817 = vrot.slane %v813, %v816
      %v818 = vlaneseq
      %v819 = vshrl.u32 %v818, 7
      %v820 = vsub.s32 1, %v819
      %v821 = vrot.slane %v813, %v820
      %v822 = vlaneseq
      %v823 = vshrl.u32 %v822, 7
      %v824 = vsub.s32 2, %v823
      %v825 = vrot.slane %v813, %v824
      %v826 = vlaneseq
      %v827 = vshrl.u32 %v826, 7
      %v828 = vsub.s32 3, %v827
      %v829 = vrot.slane %v813, %v828
      %v830 = vlaneseq
      %v831 = vshrl.u32 %v830, 7
      %v832 = vsub.s32 4, %v831
      %v833 = vrot.slane %v813, %v832
      %v834 = vlaneseq
      %v835 = vshrl.u32 %v834, 7
      %v836 = vsub.s32 5, %v835
      %v837 = vrot.slane %v813, %v836
      %v838 = vlaneseq
      %v839 = vshrl.u32 %v838, 7
      %v840 = vsub.s32 6, %v839
      %v841 = vrot.slane %v813, %v840
      %v842 = vlaneseq
      %v843 = vshrl.u32 %v842, 7
      %v844 = vsub.s32 7, %v843
      %v845 = vrot.slane %v813, %v844
      %vm846 = vcmp.eq.s32.totalorder %v817, 1
      %vm847 = vcmp.eq.s32.totalorder %v821, 1
      %vm848 = vcmp.eq.s32.totalorder %v825, 1
      %vm849 = vcmp.eq.s32.totalorder %v829, 1
      %vm850 = vcmp.eq.s32.totalorder %v833, 1
      %vm851 = vcmp.eq.s32.totalorder %v837, 1
      %vm852 = vcmp.eq.s32.totalorder %v841, 1
      %vm853 = vcmp.eq.s32.totalorder %v845, 1
      %v854 = vsel %vm846, %v809, 0.0
      %v855 = vsel %vm847, %v808, 0.0
      %v856 = vsel %vm848, %v807, 0.0
      %v857 = vsel %vm849, %v806, 0.0
      %v858 = vsel %vm850, %v805, 0.0
      %v859 = vsel %vm851, %v804, 0.0
      %v860 = vsel %vm852, %v803, 0.0
      %v861 = vsel %vm853, %v802, 0.0
      %862 = vrot.lane.b32.xlu0 %v775, 16
      %v863 = vpop.permute.xlu0 %862
      %864 = vrot.lane.b32.xlu0 %v776, 16
      %v865 = vpop.permute.xlu0 %864
      %866 = vrot.lane.b32.xlu0 %v777, 16
      %v867 = vpop.permute.xlu0 %866
      %868 = vrot.lane.b32.xlu0 %v778, 16
      %v869 = vpop.permute.xlu0 %868
      %870 = vrot.lane.b32.xlu0 %v779, 16
      %v871 = vpop.permute.xlu0 %870
      %872 = vrot.lane.b32.xlu0 %v780, 16
      %v873 = vpop.permute.xlu0 %872
      %874 = vrot.lane.b32.xlu0 %v781, 16
      %v875 = vpop.permute.xlu0 %874
      %876 = vrot.lane.b32.xlu0 %v782, 16
      %v877 = vpop.permute.xlu0 %876
      %vm878 = vcmp.lt.s32.totalorder %v800, 16
      %v879 = vsel %vm878, %v875, %v877
      %v880 = vsel %vm878, %v873, %v875
      %v881 = vsel %vm878, %v871, %v873
      %v882 = vsel %vm878, %v869, %v871
      %v883 = vsel %vm878, %v867, %v869
      %v884 = vsel %vm878, %v865, %v867
      %v885 = vsel %vm878, %v863, %v865
      %v886 = vsel %vm878, %v877, %v863
      %v887 = vsel %vm810, 1, 0
      %v888 = vlaneseq
      %v889 = vshrl.u32 %v888, 7
      %v890 = vsub.s32 0, %v889
      %v891 = vrot.slane %v887, %v890
      %v892 = vlaneseq
      %v893 = vshrl.u32 %v892, 7
      %v894 = vsub.s32 1, %v893
      %v895 = vrot.slane %v887, %v894
      %v896 = vlaneseq
      %v897 = vshrl.u32 %v896, 7
      %v898 = vsub.s32 2, %v897
      %v899 = vrot.slane %v887, %v898
      %v900 = vlaneseq
      %v901 = vshrl.u32 %v900, 7
      %v902 = vsub.s32 3, %v901
      %v903 = vrot.slane %v887, %v902
      %v904 = vlaneseq
      %v905 = vshrl.u32 %v904, 7
      %v906 = vsub.s32 4, %v905
      %v907 = vrot.slane %v887, %v906
      %v908 = vlaneseq
      %v909 = vshrl.u32 %v908, 7
      %v910 = vsub.s32 5, %v909
      %v911 = vrot.slane %v887, %v910
      %v912 = vlaneseq
      %v913 = vshrl.u32 %v912, 7
      %v914 = vsub.s32 6, %v913
      %v915 = vrot.slane %v887, %v914
      %v916 = vlaneseq
      %v917 = vshrl.u32 %v916, 7
      %v918 = vsub.s32 7, %v917
      %v919 = vrot.slane %v887, %v918
      %vm920 = vcmp.eq.s32.totalorder %v891, 1
      %vm921 = vcmp.eq.s32.totalorder %v895, 1
      %vm922 = vcmp.eq.s32.totalorder %v899, 1
      %vm923 = vcmp.eq.s32.totalorder %v903, 1
      %vm924 = vcmp.eq.s32.totalorder %v907, 1
      %vm925 = vcmp.eq.s32.totalorder %v911, 1
      %vm926 = vcmp.eq.s32.totalorder %v915, 1
      %vm927 = vcmp.eq.s32.totalorder %v919, 1
      %v928 = vsel %vm920, %v886, 0.0
      %v929 = vsel %vm921, %v885, 0.0
      %v930 = vsel %vm922, %v884, 0.0
      %v931 = vsel %vm923, %v883, 0.0
      %v932 = vsel %vm924, %v882, 0.0
      %v933 = vsel %vm925, %v881, 0.0
      %v934 = vsel %vm926, %v880, 0.0
      %v935 = vsel %vm927, %v879, 0.0
      %936 = vrot.lane.b32.xlu0 %v775, 15
      %v937 = vpop.permute.xlu0 %936
      %938 = vrot.lane.b32.xlu0 %v776, 15
      %v939 = vpop.permute.xlu0 %938
      %940 = vrot.lane.b32.xlu0 %v777, 15
      %v941 = vpop.permute.xlu0 %940
      %942 = vrot.lane.b32.xlu0 %v778, 15
      %v943 = vpop.permute.xlu0 %942
      %944 = vrot.lane.b32.xlu0 %v779, 15
      %v945 = vpop.permute.xlu0 %944
      %946 = vrot.lane.b32.xlu0 %v780, 15
      %v947 = vpop.permute.xlu0 %946
      %948 = vrot.lane.b32.xlu0 %v781, 15
      %v949 = vpop.permute.xlu0 %948
      %950 = vrot.lane.b32.xlu0 %v782, 15
      %v951 = vpop.permute.xlu0 %950
      %vm952 = vcmp.lt.s32.totalorder %v800, 15
      %v953 = vsel %vm952, %v949, %v951
      %v954 = vsel %vm952, %v947, %v949
      %v955 = vsel %vm952, %v945, %v947
      %v956 = vsel %vm952, %v943, %v945
      %v957 = vsel %vm952, %v941, %v943
      %v958 = vsel %vm952, %v939, %v941
      %v959 = vsel %vm952, %v937, %v939
      %v960 = vsel %vm952, %v951, %v937
      %vm961 = vcmp.lt.s32.totalorder %v497, 15
      %vm962 = vmand %vm810, %vm961
      %v963 = vsel %vm962, 1, 0
      %v964 = vlaneseq
      %v965 = vshrl.u32 %v964, 7
      %v966 = vsub.s32 0, %v965
      %v967 = vrot.slane %v963, %v966
      %v968 = vlaneseq
      %v969 = vshrl.u32 %v968, 7
      %v970 = vsub.s32 1, %v969
      %v971 = vrot.slane %v963, %v970
      %v972 = vlaneseq
      %v973 = vshrl.u32 %v972, 7
      %v974 = vsub.s32 2, %v973
      %v975 = vrot.slane %v963, %v974
      %v976 = vlaneseq
      %v977 = vshrl.u32 %v976, 7
      %v978 = vsub.s32 3, %v977
      %v979 = vrot.slane %v963, %v978
      %v980 = vlaneseq
      %v981 = vshrl.u32 %v980, 7
      %v982 = vsub.s32 4, %v981
      %v983 = vrot.slane %v963, %v982
      %v984 = vlaneseq
      %v985 = vshrl.u32 %v984, 7
      %v986 = vsub.s32 5, %v985
      %v987 = vrot.slane %v963, %v986
      %v988 = vlaneseq
      %v989 = vshrl.u32 %v988, 7
      %v990 = vsub.s32 6, %v989
      %v991 = vrot.slane %v963, %v990
      %v992 = vlaneseq
      %v993 = vshrl.u32 %v992, 7
      %v994 = vsub.s32 7, %v993
      %v995 = vrot.slane %v963, %v994
      %vm996 = vcmp.eq.s32.totalorder %v967, 1
      %vm997 = vcmp.eq.s32.totalorder %v971, 1
      %vm998 = vcmp.eq.s32.totalorder %v975, 1
      %vm999 = vcmp.eq.s32.totalorder %v979, 1
      %vm1000 = vcmp.eq.s32.totalorder %v983, 1
      %vm1001 = vcmp.eq.s32.totalorder %v987, 1
      %vm1002 = vcmp.eq.s32.totalorder %v991, 1
      %vm1003 = vcmp.eq.s32.totalorder %v995, 1
      %v1004 = vsel %vm996, %v960, 0.0
      %v1005 = vsel %vm997, %v959, 0.0
      %v1006 = vsel %vm998, %v958, 0.0
      %v1007 = vsel %vm999, %v957, 0.0
      %v1008 = vsel %vm1000, %v956, 0.0
      %v1009 = vsel %vm1001, %v955, 0.0
      %v1010 = vsel %vm1002, %v954, 0.0
      %v1011 = vsel %vm1003, %v953, 0.0
      %1012 = vrot.lane.b32.xlu0 %v775, 1
      %v1013 = vpop.permute.xlu0 %1012
      %1014 = vrot.lane.b32.xlu0 %v776, 1
      %v1015 = vpop.permute.xlu0 %1014
      %1016 = vrot.lane.b32.xlu0 %v777, 1
      %v1017 = vpop.permute.xlu0 %1016
      %1018 = vrot.lane.b32.xlu0 %v778, 1
      %v1019 = vpop.permute.xlu0 %1018
      %1020 = vrot.lane.b32.xlu0 %v779, 1
      %v1021 = vpop.permute.xlu0 %1020
      %1022 = vrot.lane.b32.xlu0 %v780, 1
      %v1023 = vpop.permute.xlu0 %1022
      %1024 = vrot.lane.b32.xlu0 %v781, 1
      %v1025 = vpop.permute.xlu0 %1024
      %1026 = vrot.lane.b32.xlu0 %v782, 1
      %v1027 = vpop.permute.xlu0 %1026
      %vm1028 = vcmp.lt.s32.totalorder %v800, 1
      %v1029 = vsel %vm1028, %v1025, %v1027
      %v1030 = vsel %vm1028, %v1023, %v1025
      %v1031 = vsel %vm1028, %v1021, %v1023
      %v1032 = vsel %vm1028, %v1019, %v1021
      %v1033 = vsel %vm1028, %v1017, %v1019
      %v1034 = vsel %vm1028, %v1015, %v1017
      %v1035 = vsel %vm1028, %v1013, %v1015
      %v1036 = vsel %vm1028, %v1027, %v1013
      %v1037 = vsel %vm811, 1, 0
      %v1038 = vlaneseq
      %v1039 = vshrl.u32 %v1038, 7
      %v1040 = vsub.s32 0, %v1039
      %v1041 = vrot.slane %v1037, %v1040
      %v1042 = vlaneseq
      %v1043 = vshrl.u32 %v1042, 7
      %v1044 = vsub.s32 1, %v1043
      %v1045 = vrot.slane %v1037, %v1044
      %v1046 = vlaneseq
      %v1047 = vshrl.u32 %v1046, 7
      %v1048 = vsub.s32 2, %v1047
      %v1049 = vrot.slane %v1037, %v1048
      %v1050 = vlaneseq
      %v1051 = vshrl.u32 %v1050, 7
      %v1052 = vsub.s32 3, %v1051
      %v1053 = vrot.slane %v1037, %v1052
      %v1054 = vlaneseq
      %v1055 = vshrl.u32 %v1054, 7
      %v1056 = vsub.s32 4, %v1055
      %v1057 = vrot.slane %v1037, %v1056
      %v1058 = vlaneseq
      %v1059 = vshrl.u32 %v1058, 7
      %v1060 = vsub.s32 5, %v1059
      %v1061 = vrot.slane %v1037, %v1060
      %v1062 = vlaneseq
      %v1063 = vshrl.u32 %v1062, 7
      %v1064 = vsub.s32 6, %v1063
      %v1065 = vrot.slane %v1037, %v1064
      %v1066 = vlaneseq
      %v1067 = vshrl.u32 %v1066, 7
      %v1068 = vsub.s32 7, %v1067
      %v1069 = vrot.slane %v1037, %v1068
      %vm1070 = vcmp.eq.s32.totalorder %v1041, 1
      %vm1071 = vcmp.eq.s32.totalorder %v1045, 1
      %vm1072 = vcmp.eq.s32.totalorder %v1049, 1
      %vm1073 = vcmp.eq.s32.totalorder %v1053, 1
      %vm1074 = vcmp.eq.s32.totalorder %v1057, 1
      %vm1075 = vcmp.eq.s32.totalorder %v1061, 1
      %vm1076 = vcmp.eq.s32.totalorder %v1065, 1
      %vm1077 = vcmp.eq.s32.totalorder %v1069, 1
      %v1078 = vsel %vm1070, %v1036, 0.0
      %v1079 = vsel %vm1071, %v1035, 0.0
      %v1080 = vsel %vm1072, %v1034, 0.0
      %v1081 = vsel %vm1073, %v1033, 0.0
      %v1082 = vsel %vm1074, %v1032, 0.0
      %v1083 = vsel %vm1075, %v1031, 0.0
      %v1084 = vsel %vm1076, %v1030, 0.0
      %v1085 = vsel %vm1077, %v1029, 0.0
      %1086 = vrot.lane.b32.xlu0 %v775, 127
      %v1087 = vpop.permute.xlu0 %1086
      %1088 = vrot.lane.b32.xlu0 %v776, 127
      %v1089 = vpop.permute.xlu0 %1088
      %1090 = vrot.lane.b32.xlu0 %v777, 127
      %v1091 = vpop.permute.xlu0 %1090
      %1092 = vrot.lane.b32.xlu0 %v778, 127
      %v1093 = vpop.permute.xlu0 %1092
      %1094 = vrot.lane.b32.xlu0 %v779, 127
      %v1095 = vpop.permute.xlu0 %1094
      %1096 = vrot.lane.b32.xlu0 %v780, 127
      %v1097 = vpop.permute.xlu0 %1096
      %1098 = vrot.lane.b32.xlu0 %v781, 127
      %v1099 = vpop.permute.xlu0 %1098
      %1100 = vrot.lane.b32.xlu0 %v782, 127
      %v1101 = vpop.permute.xlu0 %1100
      %vm1102 = vcmp.lt.s32.totalorder %v800, 127
      %v1103 = vsel %vm1102, %v1099, %v1101
      %v1104 = vsel %vm1102, %v1097, %v1099
      %v1105 = vsel %vm1102, %v1095, %v1097
      %v1106 = vsel %vm1102, %v1093, %v1095
      %v1107 = vsel %vm1102, %v1091, %v1093
      %v1108 = vsel %vm1102, %v1089, %v1091
      %v1109 = vsel %vm1102, %v1087, %v1089
      %v1110 = vsel %vm1102, %v1101, %v1087
      %v1111 = vsel %vm961, 1, 0
      %v1112 = vlaneseq
      %v1113 = vshrl.u32 %v1112, 7
      %v1114 = vsub.s32 0, %v1113
      %v1115 = vrot.slane %v1111, %v1114
      %v1116 = vlaneseq
      %v1117 = vshrl.u32 %v1116, 7
      %v1118 = vsub.s32 1, %v1117
      %v1119 = vrot.slane %v1111, %v1118
      %v1120 = vlaneseq
      %v1121 = vshrl.u32 %v1120, 7
      %v1122 = vsub.s32 2, %v1121
      %v1123 = vrot.slane %v1111, %v1122
      %v1124 = vlaneseq
      %v1125 = vshrl.u32 %v1124, 7
      %v1126 = vsub.s32 3, %v1125
      %v1127 = vrot.slane %v1111, %v1126
      %v1128 = vlaneseq
      %v1129 = vshrl.u32 %v1128, 7
      %v1130 = vsub.s32 4, %v1129
      %v1131 = vrot.slane %v1111, %v1130
      %v1132 = vlaneseq
      %v1133 = vshrl.u32 %v1132, 7
      %v1134 = vsub.s32 5, %v1133
      %v1135 = vrot.slane %v1111, %v1134
      %v1136 = vlaneseq
      %v1137 = vshrl.u32 %v1136, 7
      %v1138 = vsub.s32 6, %v1137
      %v1139 = vrot.slane %v1111, %v1138
      %v1140 = vlaneseq
      %v1141 = vshrl.u32 %v1140, 7
      %v1142 = vsub.s32 7, %v1141
      %v1143 = vrot.slane %v1111, %v1142
      %vm1144 = vcmp.eq.s32.totalorder %v1115, 1
      %vm1145 = vcmp.eq.s32.totalorder %v1119, 1
      %vm1146 = vcmp.eq.s32.totalorder %v1123, 1
      %vm1147 = vcmp.eq.s32.totalorder %v1127, 1
      %vm1148 = vcmp.eq.s32.totalorder %v1131, 1
      %vm1149 = vcmp.eq.s32.totalorder %v1135, 1
      %vm1150 = vcmp.eq.s32.totalorder %v1139, 1
      %vm1151 = vcmp.eq.s32.totalorder %v1143, 1
      %v1152 = vsel %vm1144, %v1109, 0.0
      %v1153 = vsel %vm1145, %v1108, 0.0
      %v1154 = vsel %vm1146, %v1107, 0.0
      %v1155 = vsel %vm1147, %v1106, 0.0
      %v1156 = vsel %vm1148, %v1105, 0.0
      %v1157 = vsel %vm1149, %v1104, 0.0
      %v1158 = vsel %vm1150, %v1103, 0.0
      %v1159 = vsel %vm1151, %v1110, 0.0
      %1160 = vrot.lane.b32.xlu0 %v775, 113
      %v1161 = vpop.permute.xlu0 %1160
      %1162 = vrot.lane.b32.xlu0 %v776, 113
      %v1163 = vpop.permute.xlu0 %1162
      %1164 = vrot.lane.b32.xlu0 %v777, 113
      %v1165 = vpop.permute.xlu0 %1164
      %1166 = vrot.lane.b32.xlu0 %v778, 113
      %v1167 = vpop.permute.xlu0 %1166
      %1168 = vrot.lane.b32.xlu0 %v779, 113
      %v1169 = vpop.permute.xlu0 %1168
      %1170 = vrot.lane.b32.xlu0 %v780, 113
      %v1171 = vpop.permute.xlu0 %1170
      %1172 = vrot.lane.b32.xlu0 %v781, 113
      %v1173 = vpop.permute.xlu0 %1172
      %1174 = vrot.lane.b32.xlu0 %v782, 113
      %v1175 = vpop.permute.xlu0 %1174
      %vm1176 = vcmp.lt.s32.totalorder %v800, 113
      %v1177 = vsel %vm1176, %v1173, %v1175
      %v1178 = vsel %vm1176, %v1171, %v1173
      %v1179 = vsel %vm1176, %v1169, %v1171
      %v1180 = vsel %vm1176, %v1167, %v1169
      %v1181 = vsel %vm1176, %v1165, %v1167
      %v1182 = vsel %vm1176, %v1163, %v1165
      %v1183 = vsel %vm1176, %v1161, %v1163
      %v1184 = vsel %vm1176, %v1175, %v1161
      %vm1185 = vcmp.lt.s32.totalorder %v495, 15
      %vm1186 = vmand %vm1185, %vm811
      %v1187 = vsel %vm1186, 1, 0
      %v1188 = vlaneseq
      %v1189 = vshrl.u32 %v1188, 7
      %v1190 = vsub.s32 0, %v1189
      %v1191 = vrot.slane %v1187, %v1190
      %v1192 = vlaneseq
      %v1193 = vshrl.u32 %v1192, 7
      %v1194 = vsub.s32 1, %v1193
      %v1195 = vrot.slane %v1187, %v1194
      %v1196 = vlaneseq
      %v1197 = vshrl.u32 %v1196, 7
      %v1198 = vsub.s32 2, %v1197
      %v1199 = vrot.slane %v1187, %v1198
      %v1200 = vlaneseq
      %v1201 = vshrl.u32 %v1200, 7
      %v1202 = vsub.s32 3, %v1201
      %v1203 = vrot.slane %v1187, %v1202
      %v1204 = vlaneseq
      %v1205 = vshrl.u32 %v1204, 7
      %v1206 = vsub.s32 4, %v1205
      %v1207 = vrot.slane %v1187, %v1206
      %v1208 = vlaneseq
      %v1209 = vshrl.u32 %v1208, 7
      %v1210 = vsub.s32 5, %v1209
      %v1211 = vrot.slane %v1187, %v1210
      %v1212 = vlaneseq
      %v1213 = vshrl.u32 %v1212, 7
      %v1214 = vsub.s32 6, %v1213
      %v1215 = vrot.slane %v1187, %v1214
      %v1216 = vlaneseq
      %v1217 = vshrl.u32 %v1216, 7
      %v1218 = vsub.s32 7, %v1217
      %v1219 = vrot.slane %v1187, %v1218
      %vm1220 = vcmp.eq.s32.totalorder %v1191, 1
      %vm1221 = vcmp.eq.s32.totalorder %v1195, 1
      %vm1222 = vcmp.eq.s32.totalorder %v1199, 1
      %vm1223 = vcmp.eq.s32.totalorder %v1203, 1
      %vm1224 = vcmp.eq.s32.totalorder %v1207, 1
      %vm1225 = vcmp.eq.s32.totalorder %v1211, 1
      %vm1226 = vcmp.eq.s32.totalorder %v1215, 1
      %vm1227 = vcmp.eq.s32.totalorder %v1219, 1
      %v1228 = vsel %vm1220, %v1183, 0.0
      %v1229 = vsel %vm1221, %v1182, 0.0
      %v1230 = vsel %vm1222, %v1181, 0.0
      %v1231 = vsel %vm1223, %v1180, 0.0
      %v1232 = vsel %vm1224, %v1179, 0.0
      %v1233 = vsel %vm1225, %v1178, 0.0
      %v1234 = vsel %vm1226, %v1177, 0.0
      %v1235 = vsel %vm1227, %v1184, 0.0
      %1236 = vrot.lane.b32.xlu0 %v775, 112
      %v1237 = vpop.permute.xlu0 %1236
      %1238 = vrot.lane.b32.xlu0 %v776, 112
      %v1239 = vpop.permute.xlu0 %1238
      %1240 = vrot.lane.b32.xlu0 %v777, 112
      %v1241 = vpop.permute.xlu0 %1240
      %1242 = vrot.lane.b32.xlu0 %v778, 112
      %v1243 = vpop.permute.xlu0 %1242
      %1244 = vrot.lane.b32.xlu0 %v779, 112
      %v1245 = vpop.permute.xlu0 %1244
      %1246 = vrot.lane.b32.xlu0 %v780, 112
      %v1247 = vpop.permute.xlu0 %1246
      %1248 = vrot.lane.b32.xlu0 %v781, 112
      %v1249 = vpop.permute.xlu0 %1248
      %1250 = vrot.lane.b32.xlu0 %v782, 112
      %v1251 = vpop.permute.xlu0 %1250
      %vm1252 = vcmp.lt.s32.totalorder %v800, 112
      %v1253 = vsel %vm1252, %v1249, %v1251
      %v1254 = vsel %vm1252, %v1247, %v1249
      %v1255 = vsel %vm1252, %v1245, %v1247
      %v1256 = vsel %vm1252, %v1243, %v1245
      %v1257 = vsel %vm1252, %v1241, %v1243
      %v1258 = vsel %vm1252, %v1239, %v1241
      %v1259 = vsel %vm1252, %v1237, %v1239
      %v1260 = vsel %vm1252, %v1251, %v1237
      %v1261 = vsel %vm1185, 1, 0
      %v1262 = vlaneseq
      %v1263 = vshrl.u32 %v1262, 7
      %v1264 = vsub.s32 0, %v1263
      %v1265 = vrot.slane %v1261, %v1264
      %v1266 = vlaneseq
      %v1267 = vshrl.u32 %v1266, 7
      %v1268 = vsub.s32 1, %v1267
      %v1269 = vrot.slane %v1261, %v1268
      %v1270 = vlaneseq
      %v1271 = vshrl.u32 %v1270, 7
      %v1272 = vsub.s32 2, %v1271
      %v1273 = vrot.slane %v1261, %v1272
      %v1274 = vlaneseq
      %v1275 = vshrl.u32 %v1274, 7
      %v1276 = vsub.s32 3, %v1275
      %v1277 = vrot.slane %v1261, %v1276
      %v1278 = vlaneseq
      %v1279 = vshrl.u32 %v1278, 7
      %v1280 = vsub.s32 4, %v1279
      %v1281 = vrot.slane %v1261, %v1280
      %v1282 = vlaneseq
      %v1283 = vshrl.u32 %v1282, 7
      %v1284 = vsub.s32 5, %v1283
      %v1285 = vrot.slane %v1261, %v1284
      %v1286 = vlaneseq
      %v1287 = vshrl.u32 %v1286, 7
      %v1288 = vsub.s32 6, %v1287
      %v1289 = vrot.slane %v1261, %v1288
      %v1290 = vlaneseq
      %v1291 = vshrl.u32 %v1290, 7
      %v1292 = vsub.s32 7, %v1291
      %v1293 = vrot.slane %v1261, %v1292
      %vm1294 = vcmp.eq.s32.totalorder %v1265, 1
      %vm1295 = vcmp.eq.s32.totalorder %v1269, 1
      %vm1296 = vcmp.eq.s32.totalorder %v1273, 1
      %vm1297 = vcmp.eq.s32.totalorder %v1277, 1
      %vm1298 = vcmp.eq.s32.totalorder %v1281, 1
      %vm1299 = vcmp.eq.s32.totalorder %v1285, 1
      %vm1300 = vcmp.eq.s32.totalorder %v1289, 1
      %vm1301 = vcmp.eq.s32.totalorder %v1293, 1
      %v1302 = vsel %vm1294, %v1259, 0.0
      %v1303 = vsel %vm1295, %v1258, 0.0
      %v1304 = vsel %vm1296, %v1257, 0.0
      %v1305 = vsel %vm1297, %v1256, 0.0
      %v1306 = vsel %vm1298, %v1255, 0.0
      %v1307 = vsel %vm1299, %v1254, 0.0
      %v1308 = vsel %vm1300, %v1253, 0.0
      %v1309 = vsel %vm1301, %v1260, 0.0
      %1310 = vrot.lane.b32.xlu0 %v775, 111
      %v1311 = vpop.permute.xlu0 %1310
      %1312 = vrot.lane.b32.xlu0 %v776, 111
      %v1313 = vpop.permute.xlu0 %1312
      %1314 = vrot.lane.b32.xlu0 %v777, 111
      %v1315 = vpop.permute.xlu0 %1314
      %1316 = vrot.lane.b32.xlu0 %v778, 111
      %v1317 = vpop.permute.xlu0 %1316
      %1318 = vrot.lane.b32.xlu0 %v779, 111
      %v1319 = vpop.permute.xlu0 %1318
      %1320 = vrot.lane.b32.xlu0 %v780, 111
      %v1321 = vpop.permute.xlu0 %1320
      %1322 = vrot.lane.b32.xlu0 %v781, 111
      %v1323 = vpop.permute.xlu0 %1322
      %1324 = vrot.lane.b32.xlu0 %v782, 111
      %v1325 = vpop.permute.xlu0 %1324
      %vm1326 = vcmp.lt.s32.totalorder %v800, 111
      %v1327 = vsel %vm1326, %v1323, %v1325
      %v1328 = vsel %vm1326, %v1321, %v1323
      %v1329 = vsel %vm1326, %v1319, %v1321
      %v1330 = vsel %vm1326, %v1317, %v1319
      %v1331 = vsel %vm1326, %v1315, %v1317
      %v1332 = vsel %vm1326, %v1313, %v1315
      %v1333 = vsel %vm1326, %v1311, %v1313
      %v1334 = vsel %vm1326, %v1325, %v1311
      %vm1335 = vmand %vm1185, %vm961
      %v1336 = vsel %vm1335, 1, 0
      %v1337 = vlaneseq
      %v1338 = vshrl.u32 %v1337, 7
      %v1339 = vsub.s32 0, %v1338
      %v1340 = vrot.slane %v1336, %v1339
      %v1341 = vlaneseq
      %v1342 = vshrl.u32 %v1341, 7
      %v1343 = vsub.s32 1, %v1342
      %v1344 = vrot.slane %v1336, %v1343
      %v1345 = vlaneseq
      %v1346 = vshrl.u32 %v1345, 7
      %v1347 = vsub.s32 2, %v1346
      %v1348 = vrot.slane %v1336, %v1347
      %v1349 = vlaneseq
      %v1350 = vshrl.u32 %v1349, 7
      %v1351 = vsub.s32 3, %v1350
      %v1352 = vrot.slane %v1336, %v1351
      %v1353 = vlaneseq
      %v1354 = vshrl.u32 %v1353, 7
      %v1355 = vsub.s32 4, %v1354
      %v1356 = vrot.slane %v1336, %v1355
      %v1357 = vlaneseq
      %v1358 = vshrl.u32 %v1357, 7
      %v1359 = vsub.s32 5, %v1358
      %v1360 = vrot.slane %v1336, %v1359
      %v1361 = vlaneseq
      %v1362 = vshrl.u32 %v1361, 7
      %v1363 = vsub.s32 6, %v1362
      %v1364 = vrot.slane %v1336, %v1363
      %v1365 = vlaneseq
      %v1366 = vshrl.u32 %v1365, 7
      %v1367 = vsub.s32 7, %v1366
      %v1368 = vrot.slane %v1336, %v1367
      %vm1369 = vcmp.eq.s32.totalorder %v1340, 1
      %vm1370 = vcmp.eq.s32.totalorder %v1344, 1
      %vm1371 = vcmp.eq.s32.totalorder %v1348, 1
      %vm1372 = vcmp.eq.s32.totalorder %v1352, 1
      %vm1373 = vcmp.eq.s32.totalorder %v1356, 1
      %vm1374 = vcmp.eq.s32.totalorder %v1360, 1
      %vm1375 = vcmp.eq.s32.totalorder %v1364, 1
      %vm1376 = vcmp.eq.s32.totalorder %v1368, 1
      %v1377 = vsel %vm1369, %v1333, 0.0
      %v1378 = vsel %vm1370, %v1332, 0.0
      %v1379 = vsel %vm1371, %v1331, 0.0
      %v1380 = vsel %vm1372, %v1330, 0.0
      %v1381 = vsel %vm1373, %v1329, 0.0
      %v1382 = vsel %vm1374, %v1328, 0.0
      %v1383 = vsel %vm1375, %v1327, 0.0
      %v1384 = vsel %vm1376, %v1334, 0.0
      %v1385 = vpack.c.bf16 %v928, %v854
      %v1386 = vpack.c.bf16 %v929, %v855
      %v1387 = vpack.c.bf16 %v930, %v856
      %v1388 = vpack.c.bf16 %v931, %v857
      %v1389 = vpack.c.bf16 %v932, %v858
      %v1390 = vpack.c.bf16 %v933, %v859
      %v1391 = vpack.c.bf16 %v934, %v860
      %v1392 = vpack.c.bf16 %v935, %v861
      %v1393 = vpack.c.bf16 %v1078, %v1004
      %v1394 = vpack.c.bf16 %v1079, %v1005
      %v1395 = vpack.c.bf16 %v1080, %v1006
      %v1396 = vpack.c.bf16 %v1081, %v1007
      %v1397 = vpack.c.bf16 %v1082, %v1008
      %v1398 = vpack.c.bf16 %v1083, %v1009
      %v1399 = vpack.c.bf16 %v1084, %v1010
      %v1400 = vpack.c.bf16 %v1085, %v1011
      %v1401 = vpack.c.bf16 %v1152, %v775
      %v1402 = vpack.c.bf16 %v1153, %v776
      %v1403 = vpack.c.bf16 %v1154, %v777
      %v1404 = vpack.c.bf16 %v1155, %v778
      %v1405 = vpack.c.bf16 %v1156, %v779
      %v1406 = vpack.c.bf16 %v1157, %v780
      %v1407 = vpack.c.bf16 %v1158, %v781
      %v1408 = vpack.c.bf16 %v1159, %v782
      %v1409 = vpack.c.bf16 %v1302, %v1228
      %v1410 = vpack.c.bf16 %v1303, %v1229
      %v1411 = vpack.c.bf16 %v1304, %v1230
      %v1412 = vpack.c.bf16 %v1305, %v1231
      %v1413 = vpack.c.bf16 %v1306, %v1232
      %v1414 = vpack.c.bf16 %v1307, %v1233
      %v1415 = vpack.c.bf16 %v1308, %v1234
      %v1416 = vpack.c.bf16 %v1309, %v1235
      %v1417 = vpack.c.bf16 %v1377, %v1377
      %v1418 = vpack.c.bf16 %v1378, %v1378
      %v1419 = vpack.c.bf16 %v1379, %v1379
      %v1420 = vpack.c.bf16 %v1380, %v1380
      %v1421 = vpack.c.bf16 %v1381, %v1381
      %v1422 = vpack.c.bf16 %v1382, %v1382
      %v1423 = vpack.c.bf16 %v1383, %v1383
      %v1424 = vpack.c.bf16 %v1384, %v1384
      %vm1425 = vcmask 588800
      %v1427 = vsel %vm1425, %v478, 0
      %vm1429 = vcmask 1043456
      %v1431 = vsel %vm1429, %v1417, 0
      %v1434 = vsel %vm1429, %v1418, 0
      %v1437 = vsel %vm1429, %v1419, 0
      %v1440 = vsel %vm1429, %v1420, 0
      %v1443 = vsel %vm1429, %v1421, 0
      %v1446 = vsel %vm1429, %v1422, 0
      %v1449 = vsel %vm1429, %v1423, 0
      %v1452 = vsel %vm1429, %v1424, 0
      %1454 = vmatprep.subr.bf16.mxu0 %v1386
      %1455 = vmatpush1.bf16.msra.mxu0 %v1385
      %1456 = vmatprep.subr.bf16.mxu0 %v1394
      %1457 = vmatpush1.bf16.msra.mxu0 %v1393
      %1458 = vmatprep.subr.bf16.mxu0 %v1402
      %1459 = vmatpush1.bf16.msra.mxu0 %v1401
      %1460 = vmatprep.subr.bf16.mxu0 %v1410
      %1461 = vmatpush1.bf16.msra.mxu0 %v1409
      %1462 = vmatprep.subr.bf16.mxu0 %v1434
      %1463 = vmatpush1.bf16.msra.mxu0 %v1431
      %1464 = vmatprep.subr.bf16.mxu0 0
      %1465 = vmatpush1.bf16.msra.mxu0 0
      %1466 = vmatprep.subr.bf16.mxu0 0
      %1467 = vmatpush1.bf16.msra.mxu0 0
      %1468 = vmatprep.subr.bf16.mxu0 0
      %1469 = vmatpush1.bf16.msra.mxu0 0
      %1470 = vmatprep.subr.bf16.mxu0 0
      %1471 = vmatpush1.bf16.msra.mxu0 0
      %1472 = vmatprep.subr.bf16.mxu0 0
      %1473 = vmatpush1.bf16.msra.mxu0 0
      %1474 = vmatprep.subr.bf16.mxu0 0
      %1475 = vmatpush1.bf16.msra.mxu0 0
      %1476 = vmatprep.subr.bf16.mxu0 0
      %1477 = vmatpush1.bf16.msra.mxu0 0
      %1478 = vmatprep.subr.bf16.mxu0 0
      %1479 = vmatpush1.bf16.msra.mxu0 0
      %1480 = vmatprep.subr.bf16.mxu0 0
      %1481 = vmatpush1.bf16.msra.mxu0 0
      %1482 = vmatprep.subr.bf16.mxu0 0
      %1483 = vmatpush1.bf16.msra.mxu0 0
      %1484 = vmatprep.subr.bf16.mxu0 0
      %1485 = vmatpush1.bf16.msra.mxu0 0
      %1486 = vmatprep.mubr.bf16.mxu0 0
      %1487 = vmatmul.mubr.bf16.gmra.mrb[0].mxu0 %v1427
      %v1488 = vpop.f32.mrb[0].mxu0
      %v1489 = vadd.f32 0.0, %v1488
      %v1490 = vpop.f32.mrb[0].mxu0
      %v1491 = vadd.f32 0.0, %v1490
      %v1492 = vpop.f32.mrb[0].mxu0
      %v1493 = vpop.f32.mrb[0].mxu0
      %1494 = vdwg.mxu0
      %1495 = vmatprep.subr.bf16.mxu0 %v1388
      %1496 = vmatpush1.bf16.msra.mxu0 %v1387
      %1497 = vmatprep.subr.bf16.mxu0 %v1396
      %1498 = vmatpush1.bf16.msra.mxu0 %v1395
      %1499 = vmatprep.subr.bf16.mxu0 %v1404
      %1500 = vmatpush1.bf16.msra.mxu0 %v1403
      %1501 = vmatprep.subr.bf16.mxu0 %v1412
      %1502 = vmatpush1.bf16.msra.mxu0 %v1411
      %1503 = vmatprep.subr.bf16.mxu0 %v1440
      %1504 = vmatpush1.bf16.msra.mxu0 %v1437
      %1505 = vmatprep.subr.bf16.mxu0 0
      %1506 = vmatpush1.bf16.msra.mxu0 0
      %1507 = vmatprep.subr.bf16.mxu0 0
      %1508 = vmatpush1.bf16.msra.mxu0 0
      %1509 = vmatprep.subr.bf16.mxu0 0
      %1510 = vmatpush1.bf16.msra.mxu0 0
      %1511 = vmatprep.subr.bf16.mxu0 0
      %1512 = vmatpush1.bf16.msra.mxu0 0
      %1513 = vmatprep.subr.bf16.mxu0 0
      %1514 = vmatpush1.bf16.msra.mxu0 0
      %1515 = vmatprep.subr.bf16.mxu0 0
      %1516 = vmatpush1.bf16.msra.mxu0 0
      %1517 = vmatprep.subr.bf16.mxu0 0
      %1518 = vmatpush1.bf16.msra.mxu0 0
      %1519 = vmatprep.subr.bf16.mxu0 0
      %1520 = vmatpush1.bf16.msra.mxu0 0
      %1521 = vmatprep.subr.bf16.mxu0 0
      %1522 = vmatpush1.bf16.msra.mxu0 0
      %1523 = vmatprep.subr.bf16.mxu0 0
      %1524 = vmatpush1.bf16.msra.mxu0 0
      %1525 = vmatprep.subr.bf16.mxu0 0
      %1526 = vmatpush1.bf16.msra.mxu0 0
      %1527 = vmatprep.mubr.bf16.mxu0 0
      %1528 = vmatmul.mubr.bf16.gmra.mrb[0].mxu0 %v1427
      %v1529 = vpop.f32.mrb[0].mxu0
      %v1530 = vadd.f32 0.0, %v1529
      %v1531 = vpop.f32.mrb[0].mxu0
      %v1532 = vadd.f32 0.0, %v1531
      %v1533 = vpop.f32.mrb[0].mxu0
      %v1534 = vpop.f32.mrb[0].mxu0
      %1535 = vdwg.mxu0
      %1536 = vmatprep.subr.bf16.mxu0 %v1390
      %1537 = vmatpush1.bf16.msra.mxu0 %v1389
      %1538 = vmatprep.subr.bf16.mxu0 %v1398
      %1539 = vmatpush1.bf16.msra.mxu0 %v1397
      %1540 = vmatprep.subr.bf16.mxu0 %v1406
      %1541 = vmatpush1.bf16.msra.mxu0 %v1405
      %1542 = vmatprep.subr.bf16.mxu0 %v1414
      %1543 = vmatpush1.bf16.msra.mxu0 %v1413
      %1544 = vmatprep.subr.bf16.mxu0 %v1446
      %1545 = vmatpush1.bf16.msra.mxu0 %v1443
      %1546 = vmatprep.subr.bf16.mxu0 0
      %1547 = vmatpush1.bf16.msra.mxu0 0
      %1548 = vmatprep.subr.bf16.mxu0 0
      %1549 = vmatpush1.bf16.msra.mxu0 0
      %1550 = vmatprep.subr.bf16.mxu0 0
      %1551 = vmatpush1.bf16.msra.mxu0 0
      %1552 = vmatprep.subr.bf16.mxu0 0
      %1553 = vmatpush1.bf16.msra.mxu0 0
      %1554 = vmatprep.subr.bf16.mxu0 0
      %1555 = vmatpush1.bf16.msra.mxu0 0
      %1556 = vmatprep.subr.bf16.mxu0 0
      %1557 = vmatpush1.bf16.msra.mxu0 0
      %1558 = vmatprep.subr.bf16.mxu0 0
      %1559 = vmatpush1.bf16.msra.mxu0 0
      %1560 = vmatprep.subr.bf16.mxu0 0
      %1561 = vmatpush1.bf16.msra.mxu0 0
      %1562 = vmatprep.subr.bf16.mxu0 0
      %1563 = vmatpush1.bf16.msra.mxu0 0
      %1564 = vmatprep.subr.bf16.mxu0 0
      %1565 = vmatpush1.bf16.msra.mxu0 0
      %1566 = vmatprep.subr.bf16.mxu0 0
      %1567 = vmatpush1.bf16.msra.mxu0 0
      %1568 = vmatprep.mubr.bf16.mxu0 0
      %1569 = vmatmul.mubr.bf16.gmra.mrb[0].mxu0 %v1427
      %v1570 = vpop.f32.mrb[0].mxu0
      %v1571 = vadd.f32 0.0, %v1570
      %v1572 = vpop.f32.mrb[0].mxu0
      %v1573 = vadd.f32 0.0, %v1572
      %v1574 = vpop.f32.mrb[0].mxu0
      %v1575 = vpop.f32.mrb[0].mxu0
      %1576 = vdwg.mxu0
      %1577 = vmatprep.subr.bf16.mxu0 %v1392
      %1578 = vmatpush1.bf16.msra.mxu0 %v1391
      %1579 = vmatprep.subr.bf16.mxu0 %v1400
      %1580 = vmatpush1.bf16.msra.mxu0 %v1399
      %1581 = vmatprep.subr.bf16.mxu0 %v1408
      %1582 = vmatpush1.bf16.msra.mxu0 %v1407
      %1583 = vmatprep.subr.bf16.mxu0 %v1416
      %1584 = vmatpush1.bf16.msra.mxu0 %v1415
      %1585 = vmatprep.subr.bf16.mxu0 %v1452
      %1586 = vmatpush1.bf16.msra.mxu0 %v1449
      %1587 = vmatprep.subr.bf16.mxu0 0
      %1588 = vmatpush1.bf16.msra.mxu0 0
      %1589 = vmatprep.subr.bf16.mxu0 0
      %1590 = vmatpush1.bf16.msra.mxu0 0
      %1591 = vmatprep.subr.bf16.mxu0 0
      %1592 = vmatpush1.bf16.msra.mxu0 0
      %1593 = vmatprep.subr.bf16.mxu0 0
      %1594 = vmatpush1.bf16.msra.mxu0 0
      %1595 = vmatprep.subr.bf16.mxu0 0
      %1596 = vmatpush1.bf16.msra.mxu0 0
      %1597 = vmatprep.subr.bf16.mxu0 0
      %1598 = vmatpush1.bf16.msra.mxu0 0
      %1599 = vmatprep.subr.bf16.mxu0 0
      %1600 = vmatpush1.bf16.msra.mxu0 0
      %1601 = vmatprep.subr.bf16.mxu0 0
      %1602 = vmatpush1.bf16.msra.mxu0 0
      %1603 = vmatprep.subr.bf16.mxu0 0
      %1604 = vmatpush1.bf16.msra.mxu0 0
      %1605 = vmatprep.subr.bf16.mxu0 0
      %1606 = vmatpush1.bf16.msra.mxu0 0
      %1607 = vmatprep.subr.bf16.mxu0 0
      %1608 = vmatpush1.bf16.msra.mxu0 0
      %1609 = vmatprep.mubr.bf16.mxu0 0
      %1610 = vmatmul.mubr.bf16.gmra.mrb[0].mxu0 %v1427
      %v1611 = vpop.f32.mrb[0].mxu0
      %v1612 = vadd.f32 0.0, %v1611
      %v1613 = vpop.f32.mrb[0].mxu0
      %v1614 = vadd.f32 0.0, %v1613
      %v1615 = vpop.f32.mrb[0].mxu0
      %v1616 = vpop.f32.mrb[0].mxu0
      %1617 = vdwg.mxu0
      %1619 = vset.pattern.permute.xlu0 0
      %1620 = vperm.xlu0 %1619, %v485
      %v1621 = vpop.permute.xlu0 %1620
      %v1623 = vmul.f32 %v1489, %v1621
      %v1624 = vmul.f32 %v1491, %v1621
      %v1625 = vmul.f32 %v1530, %v1621
      %v1626 = vmul.f32 %v1532, %v1621
      %v1627 = vmul.f32 %v1571, %v1621
      %v1628 = vmul.f32 %v1573, %v1621
      %v1629 = vmul.f32 %v1612, %v1621
      %v1630 = vmul.f32 %v1614, %v1621
      %1632 = vset.pattern.permute.xlu0 0
      %1633 = vperm.xlu0 %1632, %v486
      %v1634 = vpop.permute.xlu0 %1633
      %v1636 = vadd.f32 %v1623, %v1634
      %v1637 = vadd.f32 %v1624, %v1634
      %v1638 = vadd.f32 %v1625, %v1634
      %v1639 = vadd.f32 %v1626, %v1634
      %v1640 = vadd.f32 %v1627, %v1634
      %v1641 = vadd.f32 %v1628, %v1634
      %v1642 = vadd.f32 %v1629, %v1634
      %v1643 = vadd.f32 %v1630, %v1634
      %vm1644 = vcmp.gt.f32.partialorder %v1636, 0.0
      %vm1645 = vcmp.gt.f32.partialorder %v1637, 0.0
      %vm1646 = vcmp.gt.f32.partialorder %v1638, 0.0
      %vm1647 = vcmp.gt.f32.partialorder %v1639, 0.0
      %vm1648 = vcmp.gt.f32.partialorder %v1640, 0.0
      %vm1649 = vcmp.gt.f32.partialorder %v1641, 0.0
      %vm1650 = vcmp.gt.f32.partialorder %v1642, 0.0
      %vm1651 = vcmp.gt.f32.partialorder %v1643, 0.0
      %v1652 = vmul.f32 %v1636, 1.442695
      %v1653 = vpow.pop %v1652
      %v1654 = vmul.f32 %v1637, 1.442695
      %v1655 = vpow.pop %v1654
      %v1656 = vmul.f32 %v1638, 1.442695
      %v1657 = vpow.pop %v1656
      %v1658 = vmul.f32 %v1639, 1.442695
      %v1659 = vpow.pop %v1658
      %v1660 = vmul.f32 %v1640, 1.442695
      %v1661 = vpow.pop %v1660
      %v1662 = vmul.f32 %v1641, 1.442695
      %v1663 = vpow.pop %v1662
      %v1664 = vmul.f32 %v1642, 1.442695
      %v1665 = vpow.pop %v1664
      %v1666 = vmul.f32 %v1643, 1.442695
      %v1667 = vpow.pop %v1666
      %v1668 = vsub.f32 %v1653, 1.0
      %v1669 = vsub.f32 %v1655, 1.0
      %v1670 = vsub.f32 %v1657, 1.0
      %v1671 = vsub.f32 %v1659, 1.0
      %v1672 = vsub.f32 %v1661, 1.0
      %v1673 = vsub.f32 %v1663, 1.0
      %v1674 = vsub.f32 %v1665, 1.0
      %v1675 = vsub.f32 %v1667, 1.0
      %v1676 = vsel %vm1644, %v1636, %v1668
      %v1677 = vsel %vm1645, %v1637, %v1669
      %v1678 = vsel %vm1646, %v1638, %v1670
      %v1679 = vsel %vm1647, %v1639, %v1671
      %v1680 = vsel %vm1648, %v1640, %v1672
      %v1681 = vsel %vm1649, %v1641, %v1673
      %v1682 = vsel %vm1650, %v1642, %v1674
      %v1683 = vsel %vm1651, %v1643, %v1675
      %v1684 = vpack.c.bf16 %v1676, %v1676
      %v1685 = vpack.c.bf16 %v1677, %v1677
      %v1686 = vpack.c.bf16 %v1678, %v1678
      %v1687 = vpack.c.bf16 %v1679, %v1679
      %v1688 = vpack.c.bf16 %v1680, %v1680
      %v1689 = vpack.c.bf16 %v1681, %v1681
      %v1690 = vpack.c.bf16 %v1682, %v1682
      %v1691 = vpack.c.bf16 %v1683, %v1683
      %v1696 = vunpack.c.l.b16 %v479
      %v1697 = vunpack.c.l.b16 %v480
      %v1698 = vunpack.c.l.b16 %v481
      %v1699 = vunpack.c.l.b16 %v482
      %v1700 = vpack.c.b16 %v1697, %v1696
      %v1701 = vpack.c.b16 %v1699, %v1698
      %vm1702 = vcmask 64512
      %v1704 = vsel %vm1702, %v1700, 0
      %v1707 = vsel %vm1702, %v1701, 0
      %v1710 = vsel %vm1429, %v1684, 0
      %v1713 = vsel %vm1429, %v1685, 0
      %v1716 = vsel %vm1429, %v1686, 0
      %v1719 = vsel %vm1429, %v1687, 0
      %v1722 = vsel %vm1429, %v1688, 0
      %v1725 = vsel %vm1429, %v1689, 0
      %v1728 = vsel %vm1429, %v1690, 0
      %v1731 = vsel %vm1429, %v1691, 0
      %1733 = vmatprep.subr.bf16.mxu0 %v1713
      %1734 = vmatpush1.bf16.msra.mxu0 %v1710
      %1735 = vmatprep.subr.bf16.mxu0 0
      %1736 = vmatpush1.bf16.msra.mxu0 0
      %1737 = vmatprep.subr.bf16.mxu0 0
      %1738 = vmatpush1.bf16.msra.mxu0 0
      %1739 = vmatprep.subr.bf16.mxu0 0
      %1740 = vmatpush1.bf16.msra.mxu0 0
      %1741 = vmatprep.subr.bf16.mxu0 0
      %1742 = vmatpush1.bf16.msra.mxu0 0
      %1743 = vmatprep.subr.bf16.mxu0 0
      %1744 = vmatpush1.bf16.msra.mxu0 0
      %1745 = vmatprep.subr.bf16.mxu0 0
      %1746 = vmatpush1.bf16.msra.mxu0 0
      %1747 = vmatprep.subr.bf16.mxu0 0
      %1748 = vmatpush1.bf16.msra.mxu0 0
      %1749 = vmatprep.subr.bf16.mxu0 0
      %1750 = vmatpush1.bf16.msra.mxu0 0
      %1751 = vmatprep.subr.bf16.mxu0 0
      %1752 = vmatpush1.bf16.msra.mxu0 0
      %1753 = vmatprep.subr.bf16.mxu0 0
      %1754 = vmatpush1.bf16.msra.mxu0 0
      %1755 = vmatprep.subr.bf16.mxu0 0
      %1756 = vmatpush1.bf16.msra.mxu0 0
      %1757 = vmatprep.subr.bf16.mxu0 0
      %1758 = vmatpush1.bf16.msra.mxu0 0
      %1759 = vmatprep.subr.bf16.mxu0 0
      %1760 = vmatpush1.bf16.msra.mxu0 0
      %1761 = vmatprep.subr.bf16.mxu0 0
      %1762 = vmatpush1.bf16.msra.mxu0 0
      %1763 = vmatprep.subr.bf16.mxu0 0
      %1764 = vmatpush1.bf16.msra.mxu0 0
      %1765 = vmatprep.mubr.bf16.mxu0 0
      %1766 = vmatmul.mubr.bf16.gmra.mrb[0].mxu0 %v1704
      %v1767 = vpop.f32.mrb[0].mxu0
      %v1768 = vadd.f32 0.0, %v1767
      %v1769 = vpop.f32.mrb[0].mxu0
      %v1770 = vadd.f32 0.0, %v1769
      %v1771 = vpop.f32.mrb[0].mxu0
      %v1772 = vadd.f32 0.0, %v1771
      %v1773 = vpop.f32.mrb[0].mxu0
      %v1774 = vadd.f32 0.0, %v1773
      %1775 = vmatprep.mubr.bf16.mxu0 0
      %1776 = vmatmul.mubr.bf16.gmra.mrb[0].mxu0 %v1707
      %v1777 = vpop.f32.mrb[0].mxu0
      %v1778 = vadd.f32 0.0, %v1777
      %v1779 = vpop.f32.mrb[0].mxu0
      %v1780 = vadd.f32 0.0, %v1779
      %v1781 = vpop.f32.mrb[0].mxu0
      %v1782 = vadd.f32 0.0, %v1781
      %v1783 = vpop.f32.mrb[0].mxu0
      %v1784 = vadd.f32 0.0, %v1783
      %1785 = vdwg.mxu0
      %1786 = vmatprep.subr.bf16.mxu0 %v1719
      %1787 = vmatpush1.bf16.msra.mxu0 %v1716
      %1788 = vmatprep.subr.bf16.mxu0 0
      %1789 = vmatpush1.bf16.msra.mxu0 0
      %1790 = vmatprep.subr.bf16.mxu0 0
      %1791 = vmatpush1.bf16.msra.mxu0 0
      %1792 = vmatprep.subr.bf16.mxu0 0
      %1793 = vmatpush1.bf16.msra.mxu0 0
      %1794 = vmatprep.subr.bf16.mxu0 0
      %1795 = vmatpush1.bf16.msra.mxu0 0
      %1796 = vmatprep.subr.bf16.mxu0 0
      %1797 = vmatpush1.bf16.msra.mxu0 0
      %1798 = vmatprep.subr.bf16.mxu0 0
      %1799 = vmatpush1.bf16.msra.mxu0 0
      %1800 = vmatprep.subr.bf16.mxu0 0
      %1801 = vmatpush1.bf16.msra.mxu0 0
      %1802 = vmatprep.subr.bf16.mxu0 0
      %1803 = vmatpush1.bf16.msra.mxu0 0
      %1804 = vmatprep.subr.bf16.mxu0 0
      %1805 = vmatpush1.bf16.msra.mxu0 0
      %1806 = vmatprep.subr.bf16.mxu0 0
      %1807 = vmatpush1.bf16.msra.mxu0 0
      %1808 = vmatprep.subr.bf16.mxu0 0
      %1809 = vmatpush1.bf16.msra.mxu0 0
      %1810 = vmatprep.subr.bf16.mxu0 0
      %1811 = vmatpush1.bf16.msra.mxu0 0
      %1812 = vmatprep.subr.bf16.mxu0 0
      %1813 = vmatpush1.bf16.msra.mxu0 0
      %1814 = vmatprep.subr.bf16.mxu0 0
      %1815 = vmatpush1.bf16.msra.mxu0 0
      %1816 = vmatprep.subr.bf16.mxu0 0
      %1817 = vmatpush1.bf16.msra.mxu0 0
      %1818 = vmatprep.mubr.bf16.mxu0 0
      %1819 = vmatmul.mubr.bf16.gmra.mrb[0].mxu0 %v1704
      %v1820 = vpop.f32.mrb[0].mxu0
      %v1821 = vadd.f32 0.0, %v1820
      %v1822 = vpop.f32.mrb[0].mxu0
      %v1823 = vadd.f32 0.0, %v1822
      %v1824 = vpop.f32.mrb[0].mxu0
      %v1825 = vadd.f32 0.0, %v1824
      %v1826 = vpop.f32.mrb[0].mxu0
      %v1827 = vadd.f32 0.0, %v1826
      %1828 = vmatprep.mubr.bf16.mxu0 0
      %1829 = vmatmul.mubr.bf16.gmra.mrb[0].mxu0 %v1707
      %v1830 = vpop.f32.mrb[0].mxu0
      %v1831 = vadd.f32 0.0, %v1830
      %v1832 = vpop.f32.mrb[0].mxu0
      %v1833 = vadd.f32 0.0, %v1832
      %v1834 = vpop.f32.mrb[0].mxu0
      %v1835 = vadd.f32 0.0, %v1834
      %v1836 = vpop.f32.mrb[0].mxu0
      %v1837 = vadd.f32 0.0, %v1836
      %1838 = vdwg.mxu0
      %1839 = vmatprep.subr.bf16.mxu0 %v1725
      %1840 = vmatpush1.bf16.msra.mxu0 %v1722
      %1841 = vmatprep.subr.bf16.mxu0 0
      %1842 = vmatpush1.bf16.msra.mxu0 0
      %1843 = vmatprep.subr.bf16.mxu0 0
      %1844 = vmatpush1.bf16.msra.mxu0 0
      %1845 = vmatprep.subr.bf16.mxu0 0
      %1846 = vmatpush1.bf16.msra.mxu0 0
      %1847 = vmatprep.subr.bf16.mxu0 0
      %1848 = vmatpush1.bf16.msra.mxu0 0
      %1849 = vmatprep.subr.bf16.mxu0 0
      %1850 = vmatpush1.bf16.msra.mxu0 0
      %1851 = vmatprep.subr.bf16.mxu0 0
      %1852 = vmatpush1.bf16.msra.mxu0 0
      %1853 = vmatprep.subr.bf16.mxu0 0
      %1854 = vmatpush1.bf16.msra.mxu0 0
      %1855 = vmatprep.subr.bf16.mxu0 0
      %1856 = vmatpush1.bf16.msra.mxu0 0
      %1857 = vmatprep.subr.bf16.mxu0 0
      %1858 = vmatpush1.bf16.msra.mxu0 0
      %1859 = vmatprep.subr.bf16.mxu0 0
      %1860 = vmatpush1.bf16.msra.mxu0 0
      %1861 = vmatprep.subr.bf16.mxu0 0
      %1862 = vmatpush1.bf16.msra.mxu0 0
      %1863 = vmatprep.subr.bf16.mxu0 0
      %1864 = vmatpush1.bf16.msra.mxu0 0
      %1865 = vmatprep.subr.bf16.mxu0 0
      %1866 = vmatpush1.bf16.msra.mxu0 0
      %1867 = vmatprep.subr.bf16.mxu0 0
      %1868 = vmatpush1.bf16.msra.mxu0 0
      %1869 = vmatprep.subr.bf16.mxu0 0
      %1870 = vmatpush1.bf16.msra.mxu0 0
      %1871 = vmatprep.mubr.bf16.mxu0 0
      %1872 = vmatmul.mubr.bf16.gmra.mrb[0].mxu0 %v1704
      %v1873 = vpop.f32.mrb[0].mxu0
      %v1874 = vadd.f32 0.0, %v1873
      %v1875 = vpop.f32.mrb[0].mxu0
      %v1876 = vadd.f32 0.0, %v1875
      %v1877 = vpop.f32.mrb[0].mxu0
      %v1878 = vadd.f32 0.0, %v1877
      %v1879 = vpop.f32.mrb[0].mxu0
      %v1880 = vadd.f32 0.0, %v1879
      %1881 = vmatprep.mubr.bf16.mxu0 0
      %1882 = vmatmul.mubr.bf16.gmra.mrb[0].mxu0 %v1707
      %v1883 = vpop.f32.mrb[0].mxu0
      %v1884 = vadd.f32 0.0, %v1883
      %v1885 = vpop.f32.mrb[0].mxu0
      %v1886 = vadd.f32 0.0, %v1885
      %v1887 = vpop.f32.mrb[0].mxu0
      %v1888 = vadd.f32 0.0, %v1887
      %v1889 = vpop.f32.mrb[0].mxu0
      %v1890 = vadd.f32 0.0, %v1889
      %1891 = vdwg.mxu0
      %1892 = vmatprep.subr.bf16.mxu0 %v1731
      %1893 = vmatpush1.bf16.msra.mxu0 %v1728
      %1894 = vmatprep.subr.bf16.mxu0 0
      %1895 = vmatpush1.bf16.msra.mxu0 0
      %1896 = vmatprep.subr.bf16.mxu0 0
      %1897 = vmatpush1.bf16.msra.mxu0 0
      %1898 = vmatprep.subr.bf16.mxu0 0
      %1899 = vmatpush1.bf16.msra.mxu0 0
      %1900 = vmatprep.subr.bf16.mxu0 0
      %1901 = vmatpush1.bf16.msra.mxu0 0
      %1902 = vmatprep.subr.bf16.mxu0 0
      %1903 = vmatpush1.bf16.msra.mxu0 0
      %1904 = vmatprep.subr.bf16.mxu0 0
      %1905 = vmatpush1.bf16.msra.mxu0 0
      %1906 = vmatprep.subr.bf16.mxu0 0
      %1907 = vmatpush1.bf16.msra.mxu0 0
      %1908 = vmatprep.subr.bf16.mxu0 0
      %1909 = vmatpush1.bf16.msra.mxu0 0
      %1910 = vmatprep.subr.bf16.mxu0 0
      %1911 = vmatpush1.bf16.msra.mxu0 0
      %1912 = vmatprep.subr.bf16.mxu0 0
      %1913 = vmatpush1.bf16.msra.mxu0 0
      %1914 = vmatprep.subr.bf16.mxu0 0
      %1915 = vmatpush1.bf16.msra.mxu0 0
      %1916 = vmatprep.subr.bf16.mxu0 0
      %1917 = vmatpush1.bf16.msra.mxu0 0
      %1918 = vmatprep.subr.bf16.mxu0 0
      %1919 = vmatpush1.bf16.msra.mxu0 0
      %1920 = vmatprep.subr.bf16.mxu0 0
      %1921 = vmatpush1.bf16.msra.mxu0 0
      %1922 = vmatprep.subr.bf16.mxu0 0
      %1923 = vmatpush1.bf16.msra.mxu0 0
      %1924 = vmatprep.mubr.bf16.mxu0 0
      %1925 = vmatmul.mubr.bf16.gmra.mrb[0].mxu0 %v1704
      %v1926 = vpop.f32.mrb[0].mxu0
      %v1927 = vadd.f32 0.0, %v1926
      %v1928 = vpop.f32.mrb[0].mxu0
      %v1929 = vadd.f32 0.0, %v1928
      %v1930 = vpop.f32.mrb[0].mxu0
      %v1931 = vadd.f32 0.0, %v1930
      %v1932 = vpop.f32.mrb[0].mxu0
      %v1933 = vadd.f32 0.0, %v1932
      %1934 = vmatprep.mubr.bf16.mxu0 0
      %1935 = vmatmul.mubr.bf16.gmra.mrb[0].mxu0 %v1707
      %v1936 = vpop.f32.mrb[0].mxu0
      %v1937 = vadd.f32 0.0, %v1936
      %v1938 = vpop.f32.mrb[0].mxu0
      %v1939 = vadd.f32 0.0, %v1938
      %v1940 = vpop.f32.mrb[0].mxu0
      %v1941 = vadd.f32 0.0, %v1940
      %v1942 = vpop.f32.mrb[0].mxu0
      %v1943 = vadd.f32 0.0, %v1942
      %1944 = vdwg.mxu0
      %1946 = vset.pattern.permute.xlu0 0
      %1947 = vperm.xlu0 %1946, %v487
      %v1948 = vpop.permute.xlu0 %1947
      %1951 = vset.pattern.permute.xlu0 0
      %1952 = vperm.xlu0 %1951, %v488
      %v1953 = vpop.permute.xlu0 %1952
      %1956 = vset.pattern.permute.xlu0 0
      %1957 = vperm.xlu0 %1956, %v489
      %v1958 = vpop.permute.xlu0 %1957
      %1961 = vset.pattern.permute.xlu0 0
      %1962 = vperm.xlu0 %1961, %v490
      %v1963 = vpop.permute.xlu0 %1962
      %v1965 = vmul.f32 %v1768, %v1948
      %v1966 = vmul.f32 %v1770, %v1948
      %v1967 = vmul.f32 %v1821, %v1948
      %v1968 = vmul.f32 %v1823, %v1948
      %v1969 = vmul.f32 %v1874, %v1948
      %v1970 = vmul.f32 %v1876, %v1948
      %v1971 = vmul.f32 %v1927, %v1948
      %v1972 = vmul.f32 %v1929, %v1948
      %v1973 = vmul.f32 %v1772, %v1953
      %v1974 = vmul.f32 %v1774, %v1953
      %v1975 = vmul.f32 %v1825, %v1953
      %v1976 = vmul.f32 %v1827, %v1953
      %v1977 = vmul.f32 %v1878, %v1953
      %v1978 = vmul.f32 %v1880, %v1953
      %v1979 = vmul.f32 %v1931, %v1953
      %v1980 = vmul.f32 %v1933, %v1953
      %v1981 = vmul.f32 %v1778, %v1958
      %v1982 = vmul.f32 %v1780, %v1958
      %v1983 = vmul.f32 %v1831, %v1958
      %v1984 = vmul.f32 %v1833, %v1958
      %v1985 = vmul.f32 %v1884, %v1958
      %v1986 = vmul.f32 %v1886, %v1958
      %v1987 = vmul.f32 %v1937, %v1958
      %v1988 = vmul.f32 %v1939, %v1958
      %v1989 = vmul.f32 %v1782, %v1963
      %v1990 = vmul.f32 %v1784, %v1963
      %v1991 = vmul.f32 %v1835, %v1963
      %v1992 = vmul.f32 %v1837, %v1963
      %v1993 = vmul.f32 %v1888, %v1963
      %v1994 = vmul.f32 %v1890, %v1963
      %v1995 = vmul.f32 %v1941, %v1963
      %v1996 = vmul.f32 %v1943, %v1963
      %1998 = vset.pattern.permute.xlu0 0
      %1999 = vperm.xlu0 %1998, %v491
      %v2000 = vpop.permute.xlu0 %1999
      %2003 = vset.pattern.permute.xlu0 0
      %2004 = vperm.xlu0 %2003, %v492
      %v2005 = vpop.permute.xlu0 %2004
      %2008 = vset.pattern.permute.xlu0 0
      %2009 = vperm.xlu0 %2008, %v493
      %v2010 = vpop.permute.xlu0 %2009
      %2013 = vset.pattern.permute.xlu0 0
      %2014 = vperm.xlu0 %2013, %v494
      %v2015 = vpop.permute.xlu0 %2014
      %v2017 = vadd.f32 %v1965, %v2000
      %v2018 = vadd.f32 %v1966, %v2000
      %v2019 = vadd.f32 %v1967, %v2000
      %v2020 = vadd.f32 %v1968, %v2000
      %v2021 = vadd.f32 %v1969, %v2000
      %v2022 = vadd.f32 %v1970, %v2000
      %v2023 = vadd.f32 %v1971, %v2000
      %v2024 = vadd.f32 %v1972, %v2000
      %v2025 = vadd.f32 %v1973, %v2005
      %v2026 = vadd.f32 %v1974, %v2005
      %v2027 = vadd.f32 %v1975, %v2005
      %v2028 = vadd.f32 %v1976, %v2005
      %v2029 = vadd.f32 %v1977, %v2005
      %v2030 = vadd.f32 %v1978, %v2005
      %v2031 = vadd.f32 %v1979, %v2005
      %v2032 = vadd.f32 %v1980, %v2005
      %v2033 = vadd.f32 %v1981, %v2010
      %v2034 = vadd.f32 %v1982, %v2010
      %v2035 = vadd.f32 %v1983, %v2010
      %v2036 = vadd.f32 %v1984, %v2010
      %v2037 = vadd.f32 %v1985, %v2010
      %v2038 = vadd.f32 %v1986, %v2010
      %v2039 = vadd.f32 %v1987, %v2010
      %v2040 = vadd.f32 %v1988, %v2010
      %v2041 = vadd.f32 %v1989, %v2015
      %v2042 = vadd.f32 %v1990, %v2015
      %v2043 = vadd.f32 %v1991, %v2015
      %v2044 = vadd.f32 %v1992, %v2015
      %v2045 = vadd.f32 %v1993, %v2015
      %v2046 = vadd.f32 %v1994, %v2015
      %v2047 = vadd.f32 %v1995, %v2015
      %v2048 = vadd.f32 %v1996, %v2015
      %v2049 = vld [vmem:[%s11] sm:$0xf]
      %v2050 = vld [vmem:[%s11 + $0x4] sm:$0xf]
      %v2051 = vld [vmem:[%s11 + $0x8] sm:$0xf]
      %v2052 = vld [vmem:[%s11 + $0xc] sm:$0xf]
      %v2057 = vunpack.c.l.b16 %v2049
      %v2058 = vunpack.c.l.b16 %v2050
      %v2059 = vunpack.c.l.b16 %v2051
      %v2060 = vunpack.c.l.b16 %v2052
      %v2061 = vpack.c.b16 %v2058, %v2057
      %v2062 = vpack.c.b16 %v2060, %v2059
      %v2064 = vsel %vm549, %v2061, 0
      %v2067 = vsel %vm549, %v2062, 0
      %2069 = vmatprep.subr.bf16.mxu0 %v516
      %2070 = vmatpush1.bf16.msra.mxu0 %v515
      %2071 = vmatprep.subr.bf16.mxu0 0
      %2072 = vmatpush1.bf16.msra.mxu0 0
      %2073 = vmatprep.subr.bf16.mxu0 0
      %2074 = vmatpush1.bf16.msra.mxu0 0
      %2075 = vmatprep.subr.bf16.mxu0 0
      %2076 = vmatpush1.bf16.msra.mxu0 0
      %2077 = vmatprep.subr.bf16.mxu0 0
      %2078 = vmatpush1.bf16.msra.mxu0 0
      %2079 = vmatprep.subr.bf16.mxu0 0
      %2080 = vmatpush1.bf16.msra.mxu0 0
      %2081 = vmatprep.subr.bf16.mxu0 0
      %2082 = vmatpush1.bf16.msra.mxu0 0
      %2083 = vmatprep.subr.bf16.mxu0 0
      %2084 = vmatpush1.bf16.msra.mxu0 0
      %2085 = vmatprep.subr.bf16.mxu0 0
      %2086 = vmatpush1.bf16.msra.mxu0 0
      %2087 = vmatprep.subr.bf16.mxu0 0
      %2088 = vmatpush1.bf16.msra.mxu0 0
      %2089 = vmatprep.subr.bf16.mxu0 0
      %2090 = vmatpush1.bf16.msra.mxu0 0
      %2091 = vmatprep.subr.bf16.mxu0 0
      %2092 = vmatpush1.bf16.msra.mxu0 0
      %2093 = vmatprep.subr.bf16.mxu0 0
      %2094 = vmatpush1.bf16.msra.mxu0 0
      %2095 = vmatprep.subr.bf16.mxu0 0
      %2096 = vmatpush1.bf16.msra.mxu0 0
      %2097 = vmatprep.subr.bf16.mxu0 0
      %2098 = vmatpush1.bf16.msra.mxu0 0
      %2099 = vmatprep.subr.bf16.mxu0 0
      %2100 = vmatpush1.bf16.msra.mxu0 0
      %2101 = vmatprep.mubr.bf16.mxu0 0
      %2102 = vmatmul.mubr.bf16.gmra.mrb[0].mxu0 %v2064
      %v2103 = vpop.f32.mrb[0].mxu0
      %v2104 = vadd.f32 0.0, %v2103
      %v2105 = vpop.f32.mrb[0].mxu0
      %v2106 = vadd.f32 0.0, %v2105
      %v2107 = vpop.f32.mrb[0].mxu0
      %v2108 = vadd.f32 0.0, %v2107
      %v2109 = vpop.f32.mrb[0].mxu0
      %v2110 = vadd.f32 0.0, %v2109
      %2111 = vmatprep.mubr.bf16.mxu0 0
      %2112 = vmatmul.mubr.bf16.gmra.mrb[0].mxu0 %v2067
      %v2113 = vpop.f32.mrb[0].mxu0
      %v2114 = vadd.f32 0.0, %v2113
      %v2115 = vpop.f32.mrb[0].mxu0
      %v2116 = vadd.f32 0.0, %v2115
      %v2117 = vpop.f32.mrb[0].mxu0
      %v2118 = vadd.f32 0.0, %v2117
      %v2119 = vpop.f32.mrb[0].mxu0
      %v2120 = vadd.f32 0.0, %v2119
      %2121 = vdwg.mxu0
      %2122 = vmatprep.subr.bf16.mxu0 %v526
      %2123 = vmatpush1.bf16.msra.mxu0 %v525
      %2124 = vmatprep.subr.bf16.mxu0 0
      %2125 = vmatpush1.bf16.msra.mxu0 0
      %2126 = vmatprep.subr.bf16.mxu0 0
      %2127 = vmatpush1.bf16.msra.mxu0 0
      %2128 = vmatprep.subr.bf16.mxu0 0
      %2129 = vmatpush1.bf16.msra.mxu0 0
      %2130 = vmatprep.subr.bf16.mxu0 0
      %2131 = vmatpush1.bf16.msra.mxu0 0
      %2132 = vmatprep.subr.bf16.mxu0 0
      %2133 = vmatpush1.bf16.msra.mxu0 0
      %2134 = vmatprep.subr.bf16.mxu0 0
      %2135 = vmatpush1.bf16.msra.mxu0 0
      %2136 = vmatprep.subr.bf16.mxu0 0
      %2137 = vmatpush1.bf16.msra.mxu0 0
      %2138 = vmatprep.subr.bf16.mxu0 0
      %2139 = vmatpush1.bf16.msra.mxu0 0
      %2140 = vmatprep.subr.bf16.mxu0 0
      %2141 = vmatpush1.bf16.msra.mxu0 0
      %2142 = vmatprep.subr.bf16.mxu0 0
      %2143 = vmatpush1.bf16.msra.mxu0 0
      %2144 = vmatprep.subr.bf16.mxu0 0
      %2145 = vmatpush1.bf16.msra.mxu0 0
      %2146 = vmatprep.subr.bf16.mxu0 0
      %2147 = vmatpush1.bf16.msra.mxu0 0
      %2148 = vmatprep.subr.bf16.mxu0 0
      %2149 = vmatpush1.bf16.msra.mxu0 0
      %2150 = vmatprep.subr.bf16.mxu0 0
      %2151 = vmatpush1.bf16.msra.mxu0 0
      %2152 = vmatprep.subr.bf16.mxu0 0
      %2153 = vmatpush1.bf16.msra.mxu0 0
      %2154 = vmatprep.mubr.bf16.mxu0 0
      %2155 = vmatmul.mubr.bf16.gmra.mrb[0].mxu0 %v2064
      %v2156 = vpop.f32.mrb[0].mxu0
      %v2157 = vadd.f32 0.0, %v2156
      %v2158 = vpop.f32.mrb[0].mxu0
      %v2159 = vadd.f32 0.0, %v2158
      %v2160 = vpop.f32.mrb[0].mxu0
      %v2161 = vadd.f32 0.0, %v2160
      %v2162 = vpop.f32.mrb[0].mxu0
      %v2163 = vadd.f32 0.0, %v2162
      %2164 = vmatprep.mubr.bf16.mxu0 0
      %2165 = vmatmul.mubr.bf16.gmra.mrb[0].mxu0 %v2067
      %v2166 = vpop.f32.mrb[0].mxu0
      %v2167 = vadd.f32 0.0, %v2166
      %v2168 = vpop.f32.mrb[0].mxu0
      %v2169 = vadd.f32 0.0, %v2168
      %v2170 = vpop.f32.mrb[0].mxu0
      %v2171 = vadd.f32 0.0, %v2170
      %v2172 = vpop.f32.mrb[0].mxu0
      %v2173 = vadd.f32 0.0, %v2172
      %2174 = vdwg.mxu0
      %2175 = vmatprep.subr.bf16.mxu0 %v536
      %2176 = vmatpush1.bf16.msra.mxu0 %v535
      %2177 = vmatprep.subr.bf16.mxu0 0
      %2178 = vmatpush1.bf16.msra.mxu0 0
      %2179 = vmatprep.subr.bf16.mxu0 0
      %2180 = vmatpush1.bf16.msra.mxu0 0
      %2181 = vmatprep.subr.bf16.mxu0 0
      %2182 = vmatpush1.bf16.msra.mxu0 0
      %2183 = vmatprep.subr.bf16.mxu0 0
      %2184 = vmatpush1.bf16.msra.mxu0 0
      %2185 = vmatprep.subr.bf16.mxu0 0
      %2186 = vmatpush1.bf16.msra.mxu0 0
      %2187 = vmatprep.subr.bf16.mxu0 0
      %2188 = vmatpush1.bf16.msra.mxu0 0
      %2189 = vmatprep.subr.bf16.mxu0 0
      %2190 = vmatpush1.bf16.msra.mxu0 0
      %2191 = vmatprep.subr.bf16.mxu0 0
      %2192 = vmatpush1.bf16.msra.mxu0 0
      %2193 = vmatprep.subr.bf16.mxu0 0
      %2194 = vmatpush1.bf16.msra.mxu0 0
      %2195 = vmatprep.subr.bf16.mxu0 0
      %2196 = vmatpush1.bf16.msra.mxu0 0
      %2197 = vmatprep.subr.bf16.mxu0 0
      %2198 = vmatpush1.bf16.msra.mxu0 0
      %2199 = vmatprep.subr.bf16.mxu0 0
      %2200 = vmatpush1.bf16.msra.mxu0 0
      %2201 = vmatprep.subr.bf16.mxu0 0
      %2202 = vmatpush1.bf16.msra.mxu0 0
      %2203 = vmatprep.subr.bf16.mxu0 0
      %2204 = vmatpush1.bf16.msra.mxu0 0
      %2205 = vmatprep.subr.bf16.mxu0 0
      %2206 = vmatpush1.bf16.msra.mxu0 0
      %2207 = vmatprep.mubr.bf16.mxu0 0
      %2208 = vmatmul.mubr.bf16.gmra.mrb[0].mxu0 %v2064
      %v2209 = vpop.f32.mrb[0].mxu0
      %v2210 = vadd.f32 0.0, %v2209
      %v2211 = vpop.f32.mrb[0].mxu0
      %v2212 = vadd.f32 0.0, %v2211
      %v2213 = vpop.f32.mrb[0].mxu0
      %v2214 = vadd.f32 0.0, %v2213
      %v2215 = vpop.f32.mrb[0].mxu0
      %v2216 = vadd.f32 0.0, %v2215
      %2217 = vmatprep.mubr.bf16.mxu0 0
      %2218 = vmatmul.mubr.bf16.gmra.mrb[0].mxu0 %v2067
      %v2219 = vpop.f32.mrb[0].mxu0
      %v2220 = vadd.f32 0.0, %v2219
      %v2221 = vpop.f32.mrb[0].mxu0
      %v2222 = vadd.f32 0.0, %v2221
      %v2223 = vpop.f32.mrb[0].mxu0
      %v2224 = vadd.f32 0.0, %v2223
      %v2225 = vpop.f32.mrb[0].mxu0
      %v2226 = vadd.f32 0.0, %v2225
      %2227 = vdwg.mxu0
      %2228 = vmatprep.subr.bf16.mxu0 %v546
      %2229 = vmatpush1.bf16.msra.mxu0 %v545
      %2230 = vmatprep.subr.bf16.mxu0 0
      %2231 = vmatpush1.bf16.msra.mxu0 0
      %2232 = vmatprep.subr.bf16.mxu0 0
      %2233 = vmatpush1.bf16.msra.mxu0 0
      %2234 = vmatprep.subr.bf16.mxu0 0
      %2235 = vmatpush1.bf16.msra.mxu0 0
      %2236 = vmatprep.subr.bf16.mxu0 0
      %2237 = vmatpush1.bf16.msra.mxu0 0
      %2238 = vmatprep.subr.bf16.mxu0 0
      %2239 = vmatpush1.bf16.msra.mxu0 0
      %2240 = vmatprep.subr.bf16.mxu0 0
      %2241 = vmatpush1.bf16.msra.mxu0 0
      %2242 = vmatprep.subr.bf16.mxu0 0
      %2243 = vmatpush1.bf16.msra.mxu0 0
      %2244 = vmatprep.subr.bf16.mxu0 0
      %2245 = vmatpush1.bf16.msra.mxu0 0
      %2246 = vmatprep.subr.bf16.mxu0 0
      %2247 = vmatpush1.bf16.msra.mxu0 0
      %2248 = vmatprep.subr.bf16.mxu0 0
      %2249 = vmatpush1.bf16.msra.mxu0 0
      %2250 = vmatprep.subr.bf16.mxu0 0
      %2251 = vmatpush1.bf16.msra.mxu0 0
      %2252 = vmatprep.subr.bf16.mxu0 0
      %2253 = vmatpush1.bf16.msra.mxu0 0
      %2254 = vmatprep.subr.bf16.mxu0 0
      %2255 = vmatpush1.bf16.msra.mxu0 0
      %2256 = vmatprep.subr.bf16.mxu0 0
      %2257 = vmatpush1.bf16.msra.mxu0 0
      %2258 = vmatprep.subr.bf16.mxu0 0
      %2259 = vmatpush1.bf16.msra.mxu0 0
      %2260 = vmatprep.mubr.bf16.mxu0 0
      %2261 = vmatmul.mubr.bf16.gmra.mrb[0].mxu0 %v2064
      %v2262 = vpop.f32.mrb[0].mxu0
      %v2263 = vadd.f32 0.0, %v2262
      %v2264 = vpop.f32.mrb[0].mxu0
      %v2265 = vadd.f32 0.0, %v2264
      %v2266 = vpop.f32.mrb[0].mxu0
      %v2267 = vadd.f32 0.0, %v2266
      %v2268 = vpop.f32.mrb[0].mxu0
      %v2269 = vadd.f32 0.0, %v2268
      %2270 = vmatprep.mubr.bf16.mxu0 0
      %2271 = vmatmul.mubr.bf16.gmra.mrb[0].mxu0 %v2067
      %v2272 = vpop.f32.mrb[0].mxu0
      %v2273 = vadd.f32 0.0, %v2272
      %v2274 = vpop.f32.mrb[0].mxu0
      %v2275 = vadd.f32 0.0, %v2274
      %v2276 = vpop.f32.mrb[0].mxu0
      %v2277 = vadd.f32 0.0, %v2276
      %v2278 = vpop.f32.mrb[0].mxu0
      %v2279 = vadd.f32 0.0, %v2278
      %2280 = vdwg.mxu0
      %v2281 = vld [vmem:[%s12] sm:$0xff]
      %v2282 = vld [vmem:[%s12 + $0x8] sm:$0xff]
      %v2283 = vld [vmem:[%s12 + $0x10] sm:$0xff]
      %v2284 = vld [vmem:[%s12 + $0x18] sm:$0xff]
      %2286 = vset.pattern.permute.xlu0 0
      %2287 = vperm.xlu0 %2286, %v2281
      %v2288 = vpop.permute.xlu0 %2287
      %2291 = vset.pattern.permute.xlu0 0
      %2292 = vperm.xlu0 %2291, %v2282
      %v2293 = vpop.permute.xlu0 %2292
      %2296 = vset.pattern.permute.xlu0 0
      %2297 = vperm.xlu0 %2296, %v2283
      %v2298 = vpop.permute.xlu0 %2297
      %2301 = vset.pattern.permute.xlu0 0
      %2302 = vperm.xlu0 %2301, %v2284
      %v2303 = vpop.permute.xlu0 %2302
      %v2305 = vmul.f32 %v2104, %v2288
      %v2306 = vmul.f32 %v2106, %v2288
      %v2307 = vmul.f32 %v2157, %v2288
      %v2308 = vmul.f32 %v2159, %v2288
      %v2309 = vmul.f32 %v2210, %v2288
      %v2310 = vmul.f32 %v2212, %v2288
      %v2311 = vmul.f32 %v2263, %v2288
      %v2312 = vmul.f32 %v2265, %v2288
      %v2313 = vmul.f32 %v2108, %v2293
      %v2314 = vmul.f32 %v2110, %v2293
      %v2315 = vmul.f32 %v2161, %v2293
      %v2316 = vmul.f32 %v2163, %v2293
      %v2317 = vmul.f32 %v2214, %v2293
      %v2318 = vmul.f32 %v2216, %v2293
      %v2319 = vmul.f32 %v2267, %v2293
      %v2320 = vmul.f32 %v2269, %v2293
      %v2321 = vmul.f32 %v2114, %v2298
      %v2322 = vmul.f32 %v2116, %v2298
      %v2323 = vmul.f32 %v2167, %v2298
      %v2324 = vmul.f32 %v2169, %v2298
      %v2325 = vmul.f32 %v2220, %v2298
      %v2326 = vmul.f32 %v2222, %v2298
      %v2327 = vmul.f32 %v2273, %v2298
      %v2328 = vmul.f32 %v2275, %v2298
      %v2329 = vmul.f32 %v2118, %v2303
      %v2330 = vmul.f32 %v2120, %v2303
      %v2331 = vmul.f32 %v2171, %v2303
      %v2332 = vmul.f32 %v2173, %v2303
      %v2333 = vmul.f32 %v2224, %v2303
      %v2334 = vmul.f32 %v2226, %v2303
      %v2335 = vmul.f32 %v2277, %v2303
      %v2336 = vmul.f32 %v2279, %v2303
      %v2337 = vld [vmem:[%s13] sm:$0xff]
      %v2338 = vld [vmem:[%s13 + $0x8] sm:$0xff]
      %v2339 = vld [vmem:[%s13 + $0x10] sm:$0xff]
      %v2340 = vld [vmem:[%s13 + $0x18] sm:$0xff]
      %2342 = vset.pattern.permute.xlu0 0
      %2343 = vperm.xlu0 %2342, %v2337
      %v2344 = vpop.permute.xlu0 %2343
      %2347 = vset.pattern.permute.xlu0 0
      %2348 = vperm.xlu0 %2347, %v2338
      %v2349 = vpop.permute.xlu0 %2348
      %2352 = vset.pattern.permute.xlu0 0
      %2353 = vperm.xlu0 %2352, %v2339
      %v2354 = vpop.permute.xlu0 %2353
      %2357 = vset.pattern.permute.xlu0 0
      %2358 = vperm.xlu0 %2357, %v2340
      %v2359 = vpop.permute.xlu0 %2358
      %v2361 = vadd.f32 %v2305, %v2344
      %v2362 = vadd.f32 %v2306, %v2344
      %v2363 = vadd.f32 %v2307, %v2344
      %v2364 = vadd.f32 %v2308, %v2344
      %v2365 = vadd.f32 %v2309, %v2344
      %v2366 = vadd.f32 %v2310, %v2344
      %v2367 = vadd.f32 %v2311, %v2344
      %v2368 = vadd.f32 %v2312, %v2344
      %v2369 = vadd.f32 %v2313, %v2349
      %v2370 = vadd.f32 %v2314, %v2349
      %v2371 = vadd.f32 %v2315, %v2349
      %v2372 = vadd.f32 %v2316, %v2349
      %v2373 = vadd.f32 %v2317, %v2349
      %v2374 = vadd.f32 %v2318, %v2349
      %v2375 = vadd.f32 %v2319, %v2349
      %v2376 = vadd.f32 %v2320, %v2349
      %v2377 = vadd.f32 %v2321, %v2354
      %v2378 = vadd.f32 %v2322, %v2354
      %v2379 = vadd.f32 %v2323, %v2354
      %v2380 = vadd.f32 %v2324, %v2354
      %v2381 = vadd.f32 %v2325, %v2354
      %v2382 = vadd.f32 %v2326, %v2354
      %v2383 = vadd.f32 %v2327, %v2354
      %v2384 = vadd.f32 %v2328, %v2354
      %v2385 = vadd.f32 %v2329, %v2359
      %v2386 = vadd.f32 %v2330, %v2359
      %v2387 = vadd.f32 %v2331, %v2359
      %v2388 = vadd.f32 %v2332, %v2359
      %v2389 = vadd.f32 %v2333, %v2359
      %v2390 = vadd.f32 %v2334, %v2359
      %v2391 = vadd.f32 %v2335, %v2359
      %v2392 = vadd.f32 %v2336, %v2359
      %v2393 = vadd.f32 %v2017, %v2361
      %v2394 = vadd.f32 %v2018, %v2362
      %v2395 = vadd.f32 %v2019, %v2363
      %v2396 = vadd.f32 %v2020, %v2364
      %v2397 = vadd.f32 %v2021, %v2365
      %v2398 = vadd.f32 %v2022, %v2366
      %v2399 = vadd.f32 %v2023, %v2367
      %v2400 = vadd.f32 %v2024, %v2368
      %v2401 = vadd.f32 %v2025, %v2369
      %v2402 = vadd.f32 %v2026, %v2370
      %v2403 = vadd.f32 %v2027, %v2371
      %v2404 = vadd.f32 %v2028, %v2372
      %v2405 = vadd.f32 %v2029, %v2373
      %v2406 = vadd.f32 %v2030, %v2374
      %v2407 = vadd.f32 %v2031, %v2375
      %v2408 = vadd.f32 %v2032, %v2376
      %v2409 = vadd.f32 %v2033, %v2377
      %v2410 = vadd.f32 %v2034, %v2378
      %v2411 = vadd.f32 %v2035, %v2379
      %v2412 = vadd.f32 %v2036, %v2380
      %v2413 = vadd.f32 %v2037, %v2381
      %v2414 = vadd.f32 %v2038, %v2382
      %v2415 = vadd.f32 %v2039, %v2383
      %v2416 = vadd.f32 %v2040, %v2384
      %v2417 = vadd.f32 %v2041, %v2385
      %v2418 = vadd.f32 %v2042, %v2386
      %v2419 = vadd.f32 %v2043, %v2387
      %v2420 = vadd.f32 %v2044, %v2388
      %v2421 = vadd.f32 %v2045, %v2389
      %v2422 = vadd.f32 %v2046, %v2390
      %v2423 = vadd.f32 %v2047, %v2391
      %v2424 = vadd.f32 %v2048, %v2392
      %vm2425 = vcmp.gt.f32.partialorder %v2393, 0.0
      %vm2426 = vcmp.gt.f32.partialorder %v2394, 0.0
      %vm2427 = vcmp.gt.f32.partialorder %v2395, 0.0
      %vm2428 = vcmp.gt.f32.partialorder %v2396, 0.0
      %vm2429 = vcmp.gt.f32.partialorder %v2397, 0.0
      %vm2430 = vcmp.gt.f32.partialorder %v2398, 0.0
      %vm2431 = vcmp.gt.f32.partialorder %v2399, 0.0
      %vm2432 = vcmp.gt.f32.partialorder %v2400, 0.0
      %vm2433 = vcmp.gt.f32.partialorder %v2401, 0.0
      %vm2434 = vcmp.gt.f32.partialorder %v2402, 0.0
      %vm2435 = vcmp.gt.f32.partialorder %v2403, 0.0
      %vm2436 = vcmp.gt.f32.partialorder %v2404, 0.0
      %vm2437 = vcmp.gt.f32.partialorder %v2405, 0.0
      %vm2438 = vcmp.gt.f32.partialorder %v2406, 0.0
      %vm2439 = vcmp.gt.f32.partialorder %v2407, 0.0
      %vm2440 = vcmp.gt.f32.partialorder %v2408, 0.0
      %vm2441 = vcmp.gt.f32.partialorder %v2409, 0.0
      %vm2442 = vcmp.gt.f32.partialorder %v2410, 0.0
      %vm2443 = vcmp.gt.f32.partialorder %v2411, 0.0
      %vm2444 = vcmp.gt.f32.partialorder %v2412, 0.0
      %vm2445 = vcmp.gt.f32.partialorder %v2413, 0.0
      %vm2446 = vcmp.gt.f32.partialorder %v2414, 0.0
      %vm2447 = vcmp.gt.f32.partialorder %v2415, 0.0
      %vm2448 = vcmp.gt.f32.partialorder %v2416, 0.0
      %vm2449 = vcmp.gt.f32.partialorder %v2417, 0.0
      %vm2450 = vcmp.gt.f32.partialorder %v2418, 0.0
      %vm2451 = vcmp.gt.f32.partialorder %v2419, 0.0
      %vm2452 = vcmp.gt.f32.partialorder %v2420, 0.0
      %vm2453 = vcmp.gt.f32.partialorder %v2421, 0.0
      %vm2454 = vcmp.gt.f32.partialorder %v2422, 0.0
      %vm2455 = vcmp.gt.f32.partialorder %v2423, 0.0
      %vm2456 = vcmp.gt.f32.partialorder %v2424, 0.0
      %v2457 = vmul.f32 %v2393, 1.442695
      %v2458 = vpow.pop %v2457
      %v2459 = vmul.f32 %v2394, 1.442695
      %v2460 = vpow.pop %v2459
      %v2461 = vmul.f32 %v2395, 1.442695
      %v2462 = vpow.pop %v2461
      %v2463 = vmul.f32 %v2396, 1.442695
      %v2464 = vpow.pop %v2463
      %v2465 = vmul.f32 %v2397, 1.442695
      %v2466 = vpow.pop %v2465
      %v2467 = vmul.f32 %v2398, 1.442695
      %v2468 = vpow.pop %v2467
      %v2469 = vmul.f32 %v2399, 1.442695
      %v2470 = vpow.pop %v2469
      %v2471 = vmul.f32 %v2400, 1.442695
      %v2472 = vpow.pop %v2471
      %v2473 = vmul.f32 %v2401, 1.442695
      %v2474 = vpow.pop %v2473
      %v2475 = vmul.f32 %v2402, 1.442695
      %v2476 = vpow.pop %v2475
      %v2477 = vmul.f32 %v2403, 1.442695
      %v2478 = vpow.pop %v2477
      %v2479 = vmul.f32 %v2404, 1.442695
      %v2480 = vpow.pop %v2479
      %v2481 = vmul.f32 %v2405, 1.442695
      %v2482 = vpow.pop %v2481
      %v2483 = vmul.f32 %v2406, 1.442695
      %v2484 = vpow.pop %v2483
      %v2485 = vmul.f32 %v2407, 1.442695
      %v2486 = vpow.pop %v2485
      %v2487 = vmul.f32 %v2408, 1.442695
      %v2488 = vpow.pop %v2487
      %v2489 = vmul.f32 %v2409, 1.442695
      %v2490 = vpow.pop %v2489
      %v2491 = vmul.f32 %v2410, 1.442695
      %v2492 = vpow.pop %v2491
      %v2493 = vmul.f32 %v2411, 1.442695
      %v2494 = vpow.pop %v2493
      %v2495 = vmul.f32 %v2412, 1.442695
      %v2496 = vpow.pop %v2495
      %v2497 = vmul.f32 %v2413, 1.442695
      %v2498 = vpow.pop %v2497
      %v2499 = vmul.f32 %v2414, 1.442695
      %v2500 = vpow.pop %v2499
      %v2501 = vmul.f32 %v2415, 1.442695
      %v2502 = vpow.pop %v2501
      %v2503 = vmul.f32 %v2416, 1.442695
      %v2504 = vpow.pop %v2503
      %v2505 = vmul.f32 %v2417, 1.442695
      %v2506 = vpow.pop %v2505
      %v2507 = vmul.f32 %v2418, 1.442695
      %v2508 = vpow.pop %v2507
      %v2509 = vmul.f32 %v2419, 1.442695
      %v2510 = vpow.pop %v2509
      %v2511 = vmul.f32 %v2420, 1.442695
      %v2512 = vpow.pop %v2511
      %v2513 = vmul.f32 %v2421, 1.442695
      %v2514 = vpow.pop %v2513
      %v2515 = vmul.f32 %v2422, 1.442695
      %v2516 = vpow.pop %v2515
      %v2517 = vmul.f32 %v2423, 1.442695
      %v2518 = vpow.pop %v2517
      %v2519 = vmul.f32 %v2424, 1.442695
      %v2520 = vpow.pop %v2519
      %v2521 = vsub.f32 %v2458, 1.0
      %v2522 = vsub.f32 %v2460, 1.0
      %v2523 = vsub.f32 %v2462, 1.0
      %v2524 = vsub.f32 %v2464, 1.0
      %v2525 = vsub.f32 %v2466, 1.0
      %v2526 = vsub.f32 %v2468, 1.0
      %v2527 = vsub.f32 %v2470, 1.0
      %v2528 = vsub.f32 %v2472, 1.0
      %v2529 = vsub.f32 %v2474, 1.0
      %v2530 = vsub.f32 %v2476, 1.0
      %v2531 = vsub.f32 %v2478, 1.0
      %v2532 = vsub.f32 %v2480, 1.0
      %v2533 = vsub.f32 %v2482, 1.0
      %v2534 = vsub.f32 %v2484, 1.0
      %v2535 = vsub.f32 %v2486, 1.0
      %v2536 = vsub.f32 %v2488, 1.0
      %v2537 = vsub.f32 %v2490, 1.0
      %v2538 = vsub.f32 %v2492, 1.0
      %v2539 = vsub.f32 %v2494, 1.0
      %v2540 = vsub.f32 %v2496, 1.0
      %v2541 = vsub.f32 %v2498, 1.0
      %v2542 = vsub.f32 %v2500, 1.0
      %v2543 = vsub.f32 %v2502, 1.0
      %v2544 = vsub.f32 %v2504, 1.0
      %v2545 = vsub.f32 %v2506, 1.0
      %v2546 = vsub.f32 %v2508, 1.0
      %v2547 = vsub.f32 %v2510, 1.0
      %v2548 = vsub.f32 %v2512, 1.0
      %v2549 = vsub.f32 %v2514, 1.0
      %v2550 = vsub.f32 %v2516, 1.0
      %v2551 = vsub.f32 %v2518, 1.0
      %v2552 = vsub.f32 %v2520, 1.0
      %v2553 = vsel %vm2425, %v2393, %v2521
      %v2554 = vsel %vm2426, %v2394, %v2522
      %v2555 = vsel %vm2427, %v2395, %v2523
      %v2556 = vsel %vm2428, %v2396, %v2524
      %v2557 = vsel %vm2429, %v2397, %v2525
      %v2558 = vsel %vm2430, %v2398, %v2526
      %v2559 = vsel %vm2431, %v2399, %v2527
      %v2560 = vsel %vm2432, %v2400, %v2528
      %v2561 = vsel %vm2433, %v2401, %v2529
      %v2562 = vsel %vm2434, %v2402, %v2530
      %v2563 = vsel %vm2435, %v2403, %v2531
      %v2564 = vsel %vm2436, %v2404, %v2532
      %v2565 = vsel %vm2437, %v2405, %v2533
      %v2566 = vsel %vm2438, %v2406, %v2534
      %v2567 = vsel %vm2439, %v2407, %v2535
      %v2568 = vsel %vm2440, %v2408, %v2536
      %v2569 = vsel %vm2441, %v2409, %v2537
      %v2570 = vsel %vm2442, %v2410, %v2538
      %v2571 = vsel %vm2443, %v2411, %v2539
      %v2572 = vsel %vm2444, %v2412, %v2540
      %v2573 = vsel %vm2445, %v2413, %v2541
      %v2574 = vsel %vm2446, %v2414, %v2542
      %v2575 = vsel %vm2447, %v2415, %v2543
      %v2576 = vsel %vm2448, %v2416, %v2544
      %v2577 = vsel %vm2449, %v2417, %v2545
      %v2578 = vsel %vm2450, %v2418, %v2546
      %v2579 = vsel %vm2451, %v2419, %v2547
      %v2580 = vsel %vm2452, %v2420, %v2548
      %v2581 = vsel %vm2453, %v2421, %v2549
      %v2582 = vsel %vm2454, %v2422, %v2550
      %v2583 = vsel %vm2455, %v2423, %v2551
      %v2584 = vsel %vm2456, %v2424, %v2552
      %2585 = vst [vmem:[%s474] sm:$0xff] %v2553
      %2586 = vst [vmem:[%s474 + $0x8] sm:$0xff] %v2554
      %2587 = vst [vmem:[%s474 + $0x10] sm:$0xff] %v2561
      %2588 = vst [vmem:[%s474 + $0x18] sm:$0xff] %v2562
      %2589 = vst [vmem:[%s474 + $0x20] sm:$0xff] %v2569
      %2590 = vst [vmem:[%s474 + $0x28] sm:$0xff] %v2570
      %2591 = vst [vmem:[%s474 + $0x30] sm:$0xff] %v2577
      %2592 = vst [vmem:[%s474 + $0x38] sm:$0xff] %v2578
      %s2593 = scalar_lea.vmem %s474, 64
      %2594 = vst [vmem:[%s2593] sm:$0xff] %v2555
      %2595 = vst [vmem:[%s2593 + $0x8] sm:$0xff] %v2556
      %2596 = vst [vmem:[%s2593 + $0x10] sm:$0xff] %v2563
      %2597 = vst [vmem:[%s2593 + $0x18] sm:$0xff] %v2564
      %2598 = vst [vmem:[%s2593 + $0x20] sm:$0xff] %v2571
      %2599 = vst [vmem:[%s2593 + $0x28] sm:$0xff] %v2572
      %2600 = vst [vmem:[%s2593 + $0x30] sm:$0xff] %v2579
      %2601 = vst [vmem:[%s2593 + $0x38] sm:$0xff] %v2580
      %s2602 = scalar_lea.vmem %s474, 128
      %2603 = vst [vmem:[%s2602] sm:$0xff] %v2557
      %2604 = vst [vmem:[%s2602 + $0x8] sm:$0xff] %v2558
      %2605 = vst [vmem:[%s2602 + $0x10] sm:$0xff] %v2565
      %2606 = vst [vmem:[%s2602 + $0x18] sm:$0xff] %v2566
      %2607 = vst [vmem:[%s2602 + $0x20] sm:$0xff] %v2573
      %2608 = vst [vmem:[%s2602 + $0x28] sm:$0xff] %v2574
      %2609 = vst [vmem:[%s2602 + $0x30] sm:$0xff] %v2581
      %2610 = vst [vmem:[%s2602 + $0x38] sm:$0xff] %v2582
      %s2611 = scalar_lea.vmem %s474, 192
      %2612 = vst [vmem:[%s2611] sm:$0xff] %v2559
      %2613 = vst [vmem:[%s2611 + $0x8] sm:$0xff] %v2560
      %2614 = vst [vmem:[%s2611 + $0x10] sm:$0xff] %v2567
      %2615 = vst [vmem:[%s2611 + $0x18] sm:$0xff] %v2568
      %2616 = vst [vmem:[%s2611 + $0x20] sm:$0xff] %v2575
      %2617 = vst [vmem:[%s2611 + $0x28] sm:$0xff] %v2576
      %2618 = vst [vmem:[%s2611 + $0x30] sm:$0xff] %v2583
      %2619 = vst [vmem:[%s2611 + $0x38] sm:$0xff] %v2584
      %s2620 = smul.u32 4, %s25
      %p2621 = scmp.lt.s32.totalorder %s2620, 7
      %s2622 = scalar_select %p2621, %s2620, 7
      %s2623 = smul.addr %s2622, 8
      %s2624 = smul.addr %s2623, 8
      %s2625 = scalar_lea.vmem %s14, %s2624
      // Predicated region
      $region77: #{bottleneck_forward.1} parent=75 // pred_check
        %p2626 = pneg %p342
      $region78: #{bottleneck_forward.1} parent=75 // pred_check_branch
        %2628 = sbr.rel (%p2626) target = $region80
      $region79: #{bottleneck_forward.1} parent=75 // pred_region
        %s2629 = smul.u32 4, %s25
      $region80: #{bottleneck_forward.1} parent=75 // pred_fallthru
        _
    $region76: #{bottleneck_forward.1} parent=5 // pred_fallthru
      _
    %p2630 = scmp.le.s32.totalorder 2, %s20
    // Predicated region
    $region81: #{bottleneck_forward.1} parent=5 // pred_check
      %p2631 = pneg %p2630
    $region82: #{bottleneck_forward.1} parent=5 // pred_check_branch
      %2633 = sbr.rel (%p2631) target = $region84
    $region83: #{bottleneck_forward.1} parent=5 // pred_region
      %s2634 = ssub.s32 %s20, 2
      // Predicated region
      $region85: #{bottleneck_forward.1} parent=83 // pred_check
        %p2635 = pneg %p348
      $region86: #{bottleneck_forward.1} parent=83 // pred_check_branch
        %2637 = sbr.rel (%p2635) target = $region88
      $region87: #{bottleneck_forward.1} parent=83 // pred_region
        %s2638 = smul.u32 4, %s26
        %p2639 = scmp.lt.s32.totalorder %s2638, 7
        %s2640 = scalar_select %p2639, %s2638, 7
        %s2641 = smul.addr %s2640, 8
        %s2642 = smul.addr %s2641, 8
        %s2643 = scalar_lea.vmem %s14, %s2642
      $region88: #{bottleneck_forward.1} parent=83 // pred_fallthru
        _
    $region84: #{bottleneck_forward.1} parent=5 // pred_fallthru
      _
  $region6: #{bottleneck_forward.1} parent=0 // loop_footer
    %s24 = sadd.s32 1, %s20
  $region7: #{bottleneck_forward.1} parent=0 // loop_footer_branch
    %19 = sbr.rel target = $region3
  $region8: #{bottleneck_forward.1} parent=0 // loop_exit
    _

</llo_original>
